<compile_context>
chip_gen: v7x
topology: tpu7x:2x2x1
jax: 0.10.0
libtpu: 0.0.40
codegen_flags: <defaults>
</compile_context>

<pallas_src>
import functools

import numpy as np
import jax
import jax.numpy as jnp
from jax import lax
from jax.experimental import pallas as pl
from jax.experimental.pallas import tpu as pltpu

NEG_SLOPE = 0.01  # nn.LeakyReLU() default negative_slope


def _leaky(x):
    return jnp.where(x >= 0, x, NEG_SLOPE * x)


def _resblock_kernel(x1_ref, res_ref, w1_ref, w2_ref, wl_ref, b_ref, o_ref,
                     stk_ref, cat_ref, *, B, C, F, KH, KW, Wp, Sp, Sv, OUT):
    """Fused ResNet-block forward for a block of B samples.

    x1_ref  : (1, B, KH*KW*C, Sp) bf16  wrapper-side im2col of the padded input,
                                        rows ordered (kh, kw, cin); columns at
                                        pad-ring output positions pre-zeroed.
    res_ref : (1, B, C, Sv)       f32   residual (original input, compact layout)
    w1_ref  : (F, KH*KW*C)        bf16  conv1 weight, columns ordered (kh, kw, cin)
    w2_ref  : (F, KH*KW*F)        bf16  conv2 weight, columns ordered (kh, kw, cin)
    wl_ref  : (OUT, F*Sv)         bf16  linear weight, lane-dense, zeros at pad cols
    b_ref   : (1, OUT)            f32   linear bias
    o_ref   : (1, B, OUT)         f32   sigmoid output
    stk_ref : (B, KH*KW*F, Sv)    bf16  scratch: conv2 tap-stacked operand
    cat_ref : (B, F*Sv)           bf16  scratch: lane-concatenated linear input
    """
    KK = KH * KW
    x1 = x1_ref[0]                      # (B, KK*C, Sp) bf16
    res = res_ref[0]                    # (B, C,  Sv)  f32

    # ---- conv1: ONE batched MXU matmul, K = KK*C ----
    w1b = jnp.broadcast_to(w1_ref[...], (B, F, KK * C))
    z1 = jnp.einsum('bfk,bkm->bfm', w1b, x1,
                    preferred_element_type=jnp.float32)          # (B, F, Sp) f32
    # pad-ring columns of x1 were zeroed wrapper-side -> z1 == 0 there, and
    # leaky(0) == 0, so a1 is a correctly zero-padded activation in padded-flat
    # layout: conv2 can read its taps directly, no re-pad scratch needed.
    a1 = _leaky(z1).astype(jnp.bfloat16)                         # (B, F, Sp) bf16

    # ---- conv2: stack the 9 shifted views on the contraction axis, ONE matmul ----
    for kh in range(KH):
        for kw in range(KW):
            k = kh * KW + kw
            off = kh * Wp + kw
            stk_ref[:, k * F:(k + 1) * F, :] = a1[:, :, off:off + Sv]
    w2b = jnp.broadcast_to(w2_ref[...], (B, F, KK * F))
    z2 = jnp.einsum('bfk,bkj->bfj', w2b, stk_ref[...],
                    preferred_element_type=jnp.float32)          # (B, F, Sv) f32

    # ---- residual (+ original input) + LeakyReLU (f32 elementwise) ----
    a2 = _leaky(z2 + res).astype(jnp.bfloat16)                   # (B, F, Sv) bf16
    # wrapped columns of a2 are garbage but wl_ref holds exact zeros there.

    # ---- flatten + linear (+bias) + sigmoid: ONE lane-contraction matmul ----
    for f in range(F):
        cat_ref[:, f * Sv:(f + 1) * Sv] = a2[:, f, :]
    y = lax.dot_general(cat_ref[...], wl_ref[...],
                        dimension_numbers=(((1,), (1,)), ((), ())),
                        preferred_element_type=jnp.float32)      # (B, OUT) f32
    o_ref[0] = jax.nn.sigmoid(y + b_ref[...])


@jax.jit
def _fused_forward(x, w_conv1, w_conv2, w_lin, b_lin):
    N, C, H, W = x.shape
    F, C1, KH, KW = w_conv1.shape
    assert C1 == C and w_conv2.shape == (F, F, KH, KW)
    assert C == F, "residual add (x += input) requires in_channels == num_filters"
    PAD = (KH - 1) // 2
    assert 2 * PAD == KH - 1, "residual add requires shape-preserving 'same' padding"
    Hp, Wp = H + 2 * PAD, W + 2 * PAD
    Sp = Hp * Wp                          # padded, flattened spatial size
    Sv = (H - 1) * Wp + W                 # flat span covering all valid output pixels
    off0 = PAD * Wp + PAD                 # flat offset of output pixel (0, 0)
    KK = KH * KW
    OUT, DIN = w_lin.shape
    assert DIN == F * H * W

    # Samples per grid step (amortize the ~0.35us per-step fixed cost).
    # NOTE(v7x): with 2 TensorCores one may prefer B = N // 2 so both cores get work.
    B = next(b for b in (8, 4, 2, 1) if N % b == 0)
    Nb = N // B

    # ---- one-time, tiny wrapper-side repacks (all << 200 KB) ----
    # padded input, flattened; extended by off0 so every tap shift is a plain slice
    xp = jnp.pad(x, ((0, 0), (0, 0), (PAD, PAD), (PAD, PAD))).reshape(N, C, Sp)
    xe = jnp.pad(xp, ((0, 0), (0, 0), (off0, off0)))
    # im2col over the 9 taps: x1[n, k*C + c, m] = padded_x[n, c, m + off_k - off0]
    x1 = jnp.concatenate(
        [xe[:, :, kh * Wp + kw: kh * Wp + kw + Sp]
         for kh in range(KH) for kw in range(KW)], axis=1)        # (N, KK*C, Sp)
    # zero the columns at pad-ring output positions so conv1's output is an
    # exactly zero-padded activation (replaces the old in-kernel mask multiply).
    pos = np.arange(Sp)
    rr, cc = pos // Wp, pos % Wp
    interior = ((rr >= PAD) & (rr < PAD + H) & (cc >= PAD) & (cc < PAD + W))
    x1 = (x1 * jnp.asarray(interior, jnp.float32)[None, None, :]).astype(jnp.bfloat16)
    x1 = x1.reshape(Nb, B, KK * C, Sp)

    # residual in compact layout (zeros at the wrapped columns)
    res = jnp.pad(x, ((0, 0), (0, 0), (0, 0), (0, Wp - W))).reshape(N, C, H * Wp)
    res = res[:, :, :Sv].reshape(Nb, B, C, Sv).astype(jnp.float32)

    w1_mat = jnp.transpose(w_conv1, (0, 2, 3, 1)).reshape(F, KK * C).astype(jnp.bfloat16)
    w2_mat = jnp.transpose(w_conv2, (0, 2, 3, 1)).reshape(F, KK * F).astype(jnp.bfloat16)
    # linear weight, lane-dense: wl_cat[o, f*Sv + j], exact zeros at wrapped columns
    wl4 = w_lin.reshape(OUT, F, H, W)
    wl4 = jnp.pad(wl4, ((0, 0), (0, 0), (0, 0), (0, Wp - W)))
    wl_cat = wl4.reshape(OUT, F, H * Wp)[:, :, :Sv].reshape(OUT, F * Sv).astype(jnp.bfloat16)
    b_row = b_lin.reshape(1, OUT).astype(jnp.float32)

    kernel = functools.partial(_resblock_kernel, B=B, C=C, F=F, KH=KH, KW=KW,
                               Wp=Wp, Sp=Sp, Sv=Sv, OUT=OUT)
    y = pl.pallas_call(
        kernel,
        out_shape=jax.ShapeDtypeStruct((Nb, B, OUT), jnp.float32),
        grid=(Nb,),
        in_specs=[
            pl.BlockSpec((1, B, KK * C, Sp), lambda i: (i, 0, 0, 0)),
            pl.BlockSpec((1, B, C, Sv), lambda i: (i, 0, 0, 0)),
            pl.BlockSpec((F, KK * C), lambda i: (0, 0)),
            pl.BlockSpec((F, KK * F), lambda i: (0, 0)),
            pl.BlockSpec((OUT, F * Sv), lambda i: (0, 0)),
            pl.BlockSpec((1, OUT), lambda i: (0, 0)),
        ],
        out_specs=pl.BlockSpec((1, B, OUT), lambda i: (i, 0, 0)),
        scratch_shapes=[pltpu.VMEM((B, KK * F, Sv), jnp.bfloat16),
                        pltpu.VMEM((B, F * Sv), jnp.bfloat16)],
        compiler_params=pltpu.CompilerParams(dimension_semantics=("parallel",)),
    )(x1, res, w1_mat, w2_mat, wl_cat, b_row)
    return y.reshape(N, OUT)


def resnet_block_forward(x, w_conv1, w_conv2, w_lin, b_lin):
    # TODO(synk): the PyTorch forward's print() shape logging is intentionally omitted.
    y = _fused_forward(x, w_conv1, w_conv2, w_lin, b_lin)
    N, _, H, W = x.shape
    F = w_conv1.shape[0]
    OUT = w_lin.shape[0]
    x_shape = [(N, F, H, W), (N, F, H, W), (N, OUT)]
    return y, x_shape


def _reference_forward(x, w_conv1, w_conv2, w_lin, b_lin):
    """Pure-JAX f32 reference with identical semantics (sanity check)."""
    PAD = (w_conv1.shape[2] - 1) // 2
    dn = lax.conv_dimension_numbers(x.shape, w_conv1.shape, ("NCHW", "OIHW", "NCHW"))
    z1 = lax.conv_general_dilated(x, w_conv1, (1, 1), ((PAD, PAD), (PAD, PAD)),
                                  dimension_numbers=dn)
    a1 = jnp.where(z1 >= 0, z1, NEG_SLOPE * z1)
    z2 = lax.conv_general_dilated(a1, w_conv2, (1, 1), ((PAD, PAD), (PAD, PAD)),
                                  dimension_numbers=dn)
    z2 = z2 + x
    a2 = jnp.where(z2 >= 0, z2, NEG_SLOPE * z2)
    flat = a2.reshape(a2.shape[0], -1)
    return jax.nn.sigmoid(flat @ w_lin.T + b_lin[None, :])


if __name__ == "__main__":
    key = jax.random.PRNGKey(0)
    k_x, k1, k2, kw, kb = jax.random.split(key, 5)

    # ResNetblock(input_h=16, num_filters=4, k_size=3, in_channels=4, strides=1, padding=1)
    N, C, H, W = 2, 4, 16, 16
    NF, KS, PADDING = 4, 3, 1
    in_features = (H - 2 * KS + 4 * PADDING + 2) ** 2 * NF      # 16*16*4 = 1024
    OUT = 10

    x = jax.random.normal(k_x, (N, C, H, W), dtype=jnp.float32)

    # Deterministic synthetic parameters (not a checkpoint load).
    w_conv1 = jax.random.uniform(k1, (NF, C, KS, KS), jnp.float32,
                                 -1.0, 1.0) / np.sqrt(float(C * KS * KS))
    w_conv2 = jax.random.uniform(k2, (NF, NF, KS, KS), jnp.float32,
                                 -1.0, 1.0) / np.sqrt(float(NF * KS * KS))
    w_lin = jax.random.uniform(kw, (OUT, in_features), jnp.float32,
                               -1.0, 1.0) / np.sqrt(float(in_features))
    b_lin = jax.random.uniform(kb, (OUT,), jnp.float32,
                               -1.0, 1.0) / np.sqrt(float(in_features))

    out, shapes = resnet_block_forward(x, w_conv1, w_conv2, w_lin, b_lin)
    jax.block_until_ready(out)

    assert out.shape == (N, OUT)
    assert shapes == [(N, NF, H, W), (N, NF, H, W), (N, OUT)]

    ref = _reference_forward(x, w_conv1, w_conv2, w_lin, b_lin)
    err = float(jnp.max(jnp.abs(out - ref)))
    assert err < 3e-2, f"kernel vs reference mismatch: max abs err = {err}"

    print("KERNEL_OK")
</pallas_src>

<mosaic_0001>
module attributes {stable_mosaic.version = 11 : i64} {
  func.func @_resblock_kernel(%arg0: i32, %arg1: memref<1x2x36x324xbf16, #tpu.memory_space<vmem>>, %arg2: memref<1x2x4x286xf32, #tpu.memory_space<vmem>>, %arg3: memref<4x36xbf16, #tpu.memory_space<vmem>>, %arg4: memref<4x36xbf16, #tpu.memory_space<vmem>>, %arg5: memref<10x1144xbf16, #tpu.memory_space<vmem>>, %arg6: memref<1x10xf32, #tpu.memory_space<vmem>>, %arg7: memref<1x2x10xf32, #tpu.memory_space<vmem>>, %arg8: memref<2x36x286xbf16, #tpu.memory_space<vmem>>, %arg9: memref<2x1144xbf16, #tpu.memory_space<vmem>>) attributes {dimension_semantics = [#tpu.dimension_semantics<parallel>], iteration_bounds = array<i64: 1>, scalar_prefetch = 0 : i64, scratch_operands = 2 : i64, tpu.core_type = #tpu.core_type<tc>, window_params = [{transform_indices = @transform_0, window_bounds = array<i64: 1, 2, 36, 324>}, {transform_indices = @transform_1, window_bounds = array<i64: 1, 2, 4, 286>}, {pipeline_mode = #tpu.pipeline_mode<synchronous>, transform_indices = @transform_2, window_bounds = array<i64: 4, 36>}, {pipeline_mode = #tpu.pipeline_mode<synchronous>, transform_indices = @transform_3, window_bounds = array<i64: 4, 36>}, {pipeline_mode = #tpu.pipeline_mode<synchronous>, transform_indices = @transform_4, window_bounds = array<i64: 10, 1144>}, {pipeline_mode = #tpu.pipeline_mode<synchronous>, transform_indices = @transform_5, window_bounds = array<i64: 1, 10>}, {transform_indices = @transform_6, window_bounds = array<i64: 1, 2, 10>}]} {
    %c0 = arith.constant 0 : index
    %c0_0 = arith.constant 0 : index
    %c0_1 = arith.constant 0 : index
    %c0_2 = arith.constant 0 : index
    %0 = vector.load %arg1[%c0, %c0_0, %c0_1, %c0_2] : memref<1x2x36x324xbf16, #tpu.memory_space<vmem>>, vector<1x2x36x324xbf16>
    %1 = vector.shape_cast %0 : vector<1x2x36x324xbf16> to vector<2x36x324xbf16>
    %c0_3 = arith.constant 0 : index
    %c0_4 = arith.constant 0 : index
    %c0_5 = arith.constant 0 : index
    %c0_6 = arith.constant 0 : index
    %2 = vector.load %arg2[%c0_3, %c0_4, %c0_5, %c0_6] : memref<1x2x4x286xf32, #tpu.memory_space<vmem>>, vector<1x2x4x286xf32>
    %3 = vector.shape_cast %2 : vector<1x2x4x286xf32> to vector<2x4x286xf32>
    %c0_7 = arith.constant 0 : index
    %c0_8 = arith.constant 0 : index
    %4 = vector.load %arg3[%c0_7, %c0_8] : memref<4x36xbf16, #tpu.memory_space<vmem>>, vector<4x36xbf16>
    %5 = vector.shape_cast %4 : vector<4x36xbf16> to vector<1x4x36xbf16>
    %6 = vector.broadcast %5 : vector<1x4x36xbf16> to vector<2x4x36xbf16>
    "tpu.trace_start"() <{level = 10 : i32, message = "bfk,bkm->bfm"}> : () -> ()
    %cst = arith.constant dense<0.000000e+00> : vector<2x4x324xf32>
    %7 = tpu.matmul %6, %1, %cst {dimension_numbers = #tpu.dot_dimension_numbers<[2], [1], [1], [2], [0, 0, 0, 1, 1, 2], [0], [0]>} : vector<2x4x36xbf16>, vector<2x36x324xbf16>, vector<2x4x324xf32> -> vector<2x4x324xf32>
    %cst_9 = arith.constant 0.000000e+00 : f32
    "tpu.trace_stop"() : () -> ()
    %8 = vector.broadcast %cst_9 : f32 to vector<2x4x324xf32>
    %9 = arith.cmpf oge, %7, %8 : vector<2x4x324xf32>
    %cst_10 = arith.constant 0.00999999977 : f32
    %10 = vector.broadcast %cst_10 : f32 to vector<2x4x324xf32>
    %11 = arith.mulf %10, %7 : vector<2x4x324xf32>
    %12 = arith.select %9, %7, %11 : vector<2x4x324xi1>, vector<2x4x324xf32>
    %13 = arith.truncf %12 : vector<2x4x324xf32> to vector<2x4x324xbf16>
    %14 = vector.extract_strided_slice %13 {offsets = [0, 0, 0], sizes = [2, 4, 286], strides = [1, 1, 1]} : vector<2x4x324xbf16> to vector<2x4x286xbf16>
    %c0_11 = arith.constant 0 : index
    %c0_12 = arith.constant 0 : index
    %c0_13 = arith.constant 0 : index
    %15 = vector.load %arg8[%c0_11, %c0_12, %c0_13] : memref<2x36x286xbf16, #tpu.memory_space<vmem>>, vector<2x4x286xbf16>
    tpu.vector_store %arg8[%c0_11, %c0_12, %c0_13], %14 {strides = array<i32>} : memref<2x36x286xbf16, #tpu.memory_space<vmem>>, vector<2x4x286xbf16>,
    %16 = vector.extract_strided_slice %13 {offsets = [0, 0, 1], sizes = [2, 4, 286], strides = [1, 1, 1]} : vector<2x4x324xbf16> to vector<2x4x286xbf16>
    %c0_14 = arith.constant 0 : index
    %c4 = arith.constant 4 : index
    %c0_15 = arith.constant 0 : index
    %17 = vector.load %arg8[%c0_14, %c4, %c0_15] : memref<2x36x286xbf16, #tpu.memory_space<vmem>>, vector<2x4x286xbf16>
    tpu.vector_store %arg8[%c0_14, %c4, %c0_15], %16 {strides = array<i32>} : memref<2x36x286xbf16, #tpu.memory_space<vmem>>, vector<2x4x286xbf16>,
    %18 = vector.extract_strided_slice %13 {offsets = [0, 0, 2], sizes = [2, 4, 286], strides = [1, 1, 1]} : vector<2x4x324xbf16> to vector<2x4x286xbf16>
    %c0_16 = arith.constant 0 : index
    %c8 = arith.constant 8 : index
    %c0_17 = arith.constant 0 : index
    %19 = vector.load %arg8[%c0_16, %c8, %c0_17] : memref<2x36x286xbf16, #tpu.memory_space<vmem>>, vector<2x4x286xbf16>
    tpu.vector_store %arg8[%c0_16, %c8, %c0_17], %18 {strides = array<i32>} : memref<2x36x286xbf16, #tpu.memory_space<vmem>>, vector<2x4x286xbf16>,
    %20 = vector.extract_strided_slice %13 {offsets = [0, 0, 18], sizes = [2, 4, 286], strides = [1, 1, 1]} : vector<2x4x324xbf16> to vector<2x4x286xbf16>
    %c0_18 = arith.constant 0 : index
    %c12 = arith.constant 12 : index
    %c0_19 = arith.constant 0 : index
    %21 = vector.load %arg8[%c0_18, %c12, %c0_19] : memref<2x36x286xbf16, #tpu.memory_space<vmem>>, vector<2x4x286xbf16>
    tpu.vector_store %arg8[%c0_18, %c12, %c0_19], %20 {strides = array<i32>} : memref<2x36x286xbf16, #tpu.memory_space<vmem>>, vector<2x4x286xbf16>,
    %22 = vector.extract_strided_slice %13 {offsets = [0, 0, 19], sizes = [2, 4, 286], strides = [1, 1, 1]} : vector<2x4x324xbf16> to vector<2x4x286xbf16>
    %c0_20 = arith.constant 0 : index
    %c16 = arith.constant 16 : index
    %c0_21 = arith.constant 0 : index
    %23 = vector.load %arg8[%c0_20, %c16, %c0_21] : memref<2x36x286xbf16, #tpu.memory_space<vmem>>, vector<2x4x286xbf16>
    tpu.vector_store %arg8[%c0_20, %c16, %c0_21], %22 {strides = array<i32>} : memref<2x36x286xbf16, #tpu.memory_space<vmem>>, vector<2x4x286xbf16>,
    %24 = vector.extract_strided_slice %13 {offsets = [0, 0, 20], sizes = [2, 4, 286], strides = [1, 1, 1]} : vector<2x4x324xbf16> to vector<2x4x286xbf16>
    %c0_22 = arith.constant 0 : index
    %c20 = arith.constant 20 : index
    %c0_23 = arith.constant 0 : index
    %25 = vector.load %arg8[%c0_22, %c20, %c0_23] : memref<2x36x286xbf16, #tpu.memory_space<vmem>>, vector<2x4x286xbf16>
    tpu.vector_store %arg8[%c0_22, %c20, %c0_23], %24 {strides = array<i32>} : memref<2x36x286xbf16, #tpu.memory_space<vmem>>, vector<2x4x286xbf16>,
    %26 = vector.extract_strided_slice %13 {offsets = [0, 0, 36], sizes = [2, 4, 286], strides = [1, 1, 1]} : vector<2x4x324xbf16> to vector<2x4x286xbf16>
    %c0_24 = arith.constant 0 : index
    %c24 = arith.constant 24 : index
    %c0_25 = arith.constant 0 : index
    %27 = vector.load %arg8[%c0_24, %c24, %c0_25] : memref<2x36x286xbf16, #tpu.memory_space<vmem>>, vector<2x4x286xbf16>
    tpu.vector_store %arg8[%c0_24, %c24, %c0_25], %26 {strides = array<i32>} : memref<2x36x286xbf16, #tpu.memory_space<vmem>>, vector<2x4x286xbf16>,
    %28 = vector.extract_strided_slice %13 {offsets = [0, 0, 37], sizes = [2, 4, 286], strides = [1, 1, 1]} : vector<2x4x324xbf16> to vector<2x4x286xbf16>
    %c0_26 = arith.constant 0 : index
    %c28 = arith.constant 28 : index
    %c0_27 = arith.constant 0 : index
    %29 = vector.load %arg8[%c0_26, %c28, %c0_27] : memref<2x36x286xbf16, #tpu.memory_space<vmem>>, vector<2x4x286xbf16>
    tpu.vector_store %arg8[%c0_26, %c28, %c0_27], %28 {strides = array<i32>} : memref<2x36x286xbf16, #tpu.memory_space<vmem>>, vector<2x4x286xbf16>,
    %30 = vector.extract_strided_slice %13 {offsets = [0, 0, 38], sizes = [2, 4, 286], strides = [1, 1, 1]} : vector<2x4x324xbf16> to vector<2x4x286xbf16>
    %c0_28 = arith.constant 0 : index
    %c32 = arith.constant 32 : index
    %c0_29 = arith.constant 0 : index
    %31 = vector.load %arg8[%c0_28, %c32, %c0_29] : memref<2x36x286xbf16, #tpu.memory_space<vmem>>, vector<2x4x286xbf16>
    tpu.vector_store %arg8[%c0_28, %c32, %c0_29], %30 {strides = array<i32>} : memref<2x36x286xbf16, #tpu.memory_space<vmem>>, vector<2x4x286xbf16>,
    %c0_30 = arith.constant 0 : index
    %c0_31 = arith.constant 0 : index
    %32 = vector.load %arg4[%c0_30, %c0_31] : memref<4x36xbf16, #tpu.memory_space<vmem>>, vector<4x36xbf16>
    %33 = vector.shape_cast %32 : vector<4x36xbf16> to vector<1x4x36xbf16>
    %34 = vector.broadcast %33 : vector<1x4x36xbf16> to vector<2x4x36xbf16>
    %c0_32 = arith.constant 0 : index
    %c0_33 = arith.constant 0 : index
    %c0_34 = arith.constant 0 : index
    %35 = vector.load %arg8[%c0_32, %c0_33, %c0_34] : memref<2x36x286xbf16, #tpu.memory_space<vmem>>, vector<2x36x286xbf16>
    "tpu.trace_start"() <{level = 10 : i32, message = "bfk,bkj->bfj"}> : () -> ()
    %cst_35 = arith.constant dense<0.000000e+00> : vector<2x4x286xf32>
    %36 = tpu.matmul %34, %35, %cst_35 {dimension_numbers = #tpu.dot_dimension_numbers<[2], [1], [1], [2], [0, 0, 0, 1, 1, 2], [0], [0]>} : vector<2x4x36xbf16>, vector<2x36x286xbf16>, vector<2x4x286xf32> -> vector<2x4x286xf32>
    "tpu.trace_stop"() : () -> ()
    %37 = arith.addf %36, %3 : vector<2x4x286xf32>
    %cst_36 = arith.constant 0.000000e+00 : f32
    %38 = vector.broadcast %cst_36 : f32 to vector<2x4x286xf32>
    %39 = arith.cmpf oge, %37, %38 : vector<2x4x286xf32>
    %cst_37 = arith.constant 0.00999999977 : f32
    %40 = vector.broadcast %cst_37 : f32 to vector<2x4x286xf32>
    %41 = arith.mulf %40, %37 : vector<2x4x286xf32>
    %42 = arith.select %39, %37, %41 : vector<2x4x286xi1>, vector<2x4x286xf32>
    %43 = arith.truncf %42 : vector<2x4x286xf32> to vector<2x4x286xbf16>
    %44 = vector.extract_strided_slice %43 {offsets = [0, 0, 0], sizes = [2, 1, 286], strides = [1, 1, 1]} : vector<2x4x286xbf16> to vector<2x1x286xbf16>
    %45 = vector.shape_cast %44 : vector<2x1x286xbf16> to vector<2x286xbf16>
    %c0_38 = arith.constant 0 : index
    %c0_39 = arith.constant 0 : index
    %46 = vector.load %arg9[%c0_38, %c0_39] : memref<2x1144xbf16, #tpu.memory_space<vmem>>, vector<2x286xbf16>
    tpu.vector_store %arg9[%c0_38, %c0_39], %45 {strides = array<i32>} : memref<2x1144xbf16, #tpu.memory_space<vmem>>, vector<2x286xbf16>,
    %47 = vector.extract_strided_slice %43 {offsets = [0, 1, 0], sizes = [2, 1, 286], strides = [1, 1, 1]} : vector<2x4x286xbf16> to vector<2x1x286xbf16>
    %48 = vector.shape_cast %47 : vector<2x1x286xbf16> to vector<2x286xbf16>
    %c0_40 = arith.constant 0 : index
    %c286 = arith.constant 286 : index
    %49 = vector.load %arg9[%c0_40, %c286] : memref<2x1144xbf16, #tpu.memory_space<vmem>>, vector<2x286xbf16>
    tpu.vector_store %arg9[%c0_40, %c286], %48 {strides = array<i32>} : memref<2x1144xbf16, #tpu.memory_space<vmem>>, vector<2x286xbf16>,
    %50 = vector.extract_strided_slice %43 {offsets = [0, 2, 0], sizes = [2, 1, 286], strides = [1, 1, 1]} : vector<2x4x286xbf16> to vector<2x1x286xbf16>
    %51 = vector.shape_cast %50 : vector<2x1x286xbf16> to vector<2x286xbf16>
    %c0_41 = arith.constant 0 : index
    %c572 = arith.constant 572 : index
    %52 = vector.load %arg9[%c0_41, %c572] : memref<2x1144xbf16, #tpu.memory_space<vmem>>, vector<2x286xbf16>
    tpu.vector_store %arg9[%c0_41, %c572], %51 {strides = array<i32>} : memref<2x1144xbf16, #tpu.memory_space<vmem>>, vector<2x286xbf16>,
    %53 = vector.extract_strided_slice %43 {offsets = [0, 3, 0], sizes = [2, 1, 286], strides = [1, 1, 1]} : vector<2x4x286xbf16> to vector<2x1x286xbf16>
    %54 = vector.shape_cast %53 : vector<2x1x286xbf16> to vector<2x286xbf16>
    %c0_42 = arith.constant 0 : index
    %c858 = arith.constant 858 : index
    %55 = vector.load %arg9[%c0_42, %c858] : memref<2x1144xbf16, #tpu.memory_space<vmem>>, vector<2x286xbf16>
    tpu.vector_store %arg9[%c0_42, %c858], %54 {strides = array<i32>} : memref<2x1144xbf16, #tpu.memory_space<vmem>>, vector<2x286xbf16>,
    %c0_43 = arith.constant 0 : index
    %c0_44 = arith.constant 0 : index
    %56 = vector.load %arg9[%c0_43, %c0_44] : memref<2x1144xbf16, #tpu.memory_space<vmem>>, vector<2x1144xbf16>
    %c0_45 = arith.constant 0 : index
    %c0_46 = arith.constant 0 : index
    %57 = vector.load %arg5[%c0_45, %c0_46] : memref<10x1144xbf16, #tpu.memory_space<vmem>>, vector<10x1144xbf16>
    %cst_47 = arith.constant dense<0.000000e+00> : vector<2x10xf32>
    %58 = tpu.matmul %56, %57, %cst_47 {dimension_numbers = #tpu.dot_dimension_numbers<[1], [1], [0], [0], [0, 0, 1, 0], [], []>} : vector<2x1144xbf16>, vector<10x1144xbf16>, vector<2x10xf32> -> vector<2x10xf32>
    %c0_48 = arith.constant 0 : index
    %c0_49 = arith.constant 0 : index
    %59 = vector.load %arg6[%c0_48, %c0_49] : memref<1x10xf32, #tpu.memory_space<vmem>>, vector<1x10xf32>
    %60 = vector.broadcast %59 : vector<1x10xf32> to vector<2x10xf32>
    %61 = arith.addf %58, %60 : vector<2x10xf32>
    %62 = arith.negf %61 : vector<2x10xf32>
    %63 = math.exp %62 : vector<2x10xf32>
    %cst_50 = arith.constant 1.000000e+00 : f32
    %64 = vector.broadcast %cst_50 : f32 to vector<2x10xf32>
    %65 = arith.addf %64, %63 : vector<2x10xf32>
    %66 = arith.divf %64, %65 : vector<2x10xf32>
    %c0_51 = arith.constant 0 : index
    %c0_52 = arith.constant 0 : index
    %c0_53 = arith.constant 0 : index
    %67 = vector.load %arg7[%c0_51, %c0_52, %c0_53] : memref<1x2x10xf32, #tpu.memory_space<vmem>>, vector<1x2x10xf32>
    %68 = vector.shape_cast %67 : vector<1x2x10xf32> to vector<2x10xf32>
    %69 = vector.shape_cast %66 : vector<2x10xf32> to vector<1x2x10xf32>
    tpu.vector_store %arg7[%c0_51, %c0_52, %c0_53], %69 {strides = array<i32>} : memref<1x2x10xf32, #tpu.memory_space<vmem>>, vector<1x2x10xf32>,
    return
  }
  func.func @transform_0(%arg0: i32) -> (i32, i32, i32, i32) {
    %c0_i32 = arith.constant 0 : i32
    %c0_i32_0 = arith.constant 0 : i32
    %c0_i32_1 = arith.constant 0 : i32
    %c0_i32_2 = arith.constant 0 : i32
    return %arg0, %c0_i32, %c0_i32_0, %c0_i32_1 : i32, i32, i32, i32
  }
  func.func @transform_1(%arg0: i32) -> (i32, i32, i32, i32) {
    %c0_i32 = arith.constant 0 : i32
    %c0_i32_0 = arith.constant 0 : i32
    %c0_i32_1 = arith.constant 0 : i32
    %c0_i32_2 = arith.constant 0 : i32
    return %arg0, %c0_i32, %c0_i32_0, %c0_i32_1 : i32, i32, i32, i32
  }
  func.func @transform_2(%arg0: i32) -> (i32, i32) {
    %c0_i32 = arith.constant 0 : i32
    %c0_i32_0 = arith.constant 0 : i32
    %c0_i32_1 = arith.constant 0 : i32
    return %c0_i32, %c0_i32_0 : i32, i32
  }
  func.func @transform_3(%arg0: i32) -> (i32, i32) {
    %c0_i32 = arith.constant 0 : i32
    %c0_i32_0 = arith.constant 0 : i32
    %c0_i32_1 = arith.constant 0 : i32
    return %c0_i32, %c0_i32_0 : i32, i32
  }
  func.func @transform_4(%arg0: i32) -> (i32, i32) {
    %c0_i32 = arith.constant 0 : i32
    %c0_i32_0 = arith.constant 0 : i32
    %c0_i32_1 = arith.constant 0 : i32
    return %c0_i32, %c0_i32_0 : i32, i32
  }
  func.func @transform_5(%arg0: i32) -> (i32, i32) {
    %c0_i32 = arith.constant 0 : i32
    %c0_i32_0 = arith.constant 0 : i32
    %c0_i32_1 = arith.constant 0 : i32
    return %c0_i32, %c0_i32_0 : i32, i32
  }
  func.func @transform_6(%arg0: i32) -> (i32, i32, i32) {
    %c0_i32 = arith.constant 0 : i32
    %c0_i32_0 = arith.constant 0 : i32
    %c0_i32_1 = arith.constant 0 : i32
    return %arg0, %c0_i32, %c0_i32_0 : i32, i32, i32
  }
}

</mosaic_0001>

<llo_original>
// kernel: _fused_forward.1
$region0: #{_fused_forward.1}
  #allocation0 [shape = 'u32[]', space=smem, size = 0x4, offset = 0x4, fixed_abs, tag = 'smem constant byte address 0x4 - core index']
  #allocation1 [shape = 'u32[144,128]{1,0:T(1,128)}', space=vmem, size = 0x12000, scoped, tag = 'internal scratch']
  #allocation2 [shape = 'bf16[2,36,286]{2,1,0:T(8,128)(2,1)}', space=vmem, size = 0xf000, scoped, tag = 'scratch operand']
  #allocation3 [shape = 'bf16[2,1144]{1,0:T(2,128)(2,1)}', space=vmem, size = 0x1200, scoped, tag = 'scratch operand']
  %s0 = inlined_call_operand.vmem [shape: bf16[1,2,36,324], index: 0, kind: input, shape index: {}]
  %s1 = inlined_call_operand.vmem [shape: f32[1,2,4,286], index: 1, kind: input, shape index: {}]
  %s2 = inlined_call_operand.vmem [shape: bf16[4,36], index: 2, kind: input, shape index: {}]
  %s3 = inlined_call_operand.vmem [shape: bf16[4,36], index: 3, kind: input, shape index: {}]
  %s4 = inlined_call_operand.vmem [shape: bf16[10,1144], index: 4, kind: input, shape index: {}]
  %s5 = inlined_call_operand.vmem [shape: f32[1,10], index: 5, kind: input, shape index: {}]
  %s6 = inlined_call_operand.hbm [shape: f32[1,2,10], index: 6, kind: output, shape index: {}]
  %s7 = sld [smem:[#allocation0]]
  $region34: #{_fused_forward.1} parent=0
    _
  %s9 = ssub.s32 1, %s7
  %s10 = scalar_select 0, %s9, %s7
  $region1: #{_fused_forward.1} parent=0
    #allocation4 [shape = 'u8[1024]{0}', space=vmem, size = 0x400, scoped, tag = 'output window, operand 0, single buffered']
    #allocation5 [shape = 's32[1]{0}', space=sflag, size = 0x4, scoped, tag = 'scoped memory for _fused_forward.1']
    %11 = vsyncpa [#allocation5], 0
    // Predicated region
    $region2: #{_fused_forward.1} parent=1 // pred_check
      _
    $region3: #{_fused_forward.1} parent=1 // pred_check_branch
      %13 = sbr.rel (0) target = $region5
    $region4: #{_fused_forward.1} parent=1 // pred_region
      _
    $region5: #{_fused_forward.1} parent=1 // pred_fallthru
      _
    // Predicated region
    $region6: #{_fused_forward.1} parent=1 // pred_check
      _
    $region7: #{_fused_forward.1} parent=1 // pred_check_branch
      %15 = sbr.rel (0) target = $region9
    $region8: #{_fused_forward.1} parent=1 // pred_region
      _
    $region9: #{_fused_forward.1} parent=1 // pred_fallthru
      _
    // Predicated region
    $region10: #{_fused_forward.1} parent=1 // pred_check
      _
    $region11: #{_fused_forward.1} parent=1 // pred_check_branch
      %17 = sbr.rel (0) target = $region13
    $region12: #{_fused_forward.1} parent=1 // pred_region
      _
    $region13: #{_fused_forward.1} parent=1 // pred_fallthru
      _
    // Predicated region
    $region14: #{_fused_forward.1} parent=1 // pred_check
      _
    $region15: #{_fused_forward.1} parent=1 // pred_check_branch
      %19 = sbr.rel (0) target = $region17
    $region16: #{_fused_forward.1} parent=1 // pred_region
      _
    $region17: #{_fused_forward.1} parent=1 // pred_fallthru
      _
    // Predicated region
    $region18: #{_fused_forward.1} parent=1 // pred_check
      _
    $region19: #{_fused_forward.1} parent=1 // pred_check_branch
      %21 = sbr.rel (0) target = $region21
    $region20: #{_fused_forward.1} parent=1 // pred_region
      _
    $region21: #{_fused_forward.1} parent=1 // pred_fallthru
      _
    // Predicated region
    $region22: #{_fused_forward.1} parent=1 // pred_check
      _
    $region23: #{_fused_forward.1} parent=1 // pred_check_branch
      %23 = sbr.rel (0) target = $region25
    $region24: #{_fused_forward.1} parent=1 // pred_region
      _
    $region25: #{_fused_forward.1} parent=1 // pred_fallthru
      _
    %v25 = vld [vmem:[%s0] sm:$0xff]
    %v26 = vld [vmem:[%s0 + $0x8] sm:$0xf]
    %v27 = vld [vmem:[%s0 + $0xc] sm:$0xff]
    %v28 = vld [vmem:[%s0 + $0x14] sm:$0xf]
    %v29 = vld [vmem:[%s0 + $0x18] sm:$0xff]
    %v30 = vld [vmem:[%s0 + $0x20] sm:$0xf]
    %v31 = vld [vmem:[%s0 + $0x24] sm:$0xff]
    %v32 = vld [vmem:[%s0 + $0x2c] sm:$0xf]
    %v33 = vld [vmem:[%s0 + $0x30] sm:$0x33]
    %v34 = vld [vmem:[%s0 + $0x38] sm:$0x3]
    %v35 = vld [vmem:[%s0 + $0x3c] sm:$0xff]
    %v36 = vld [vmem:[%s0 + $0x44] sm:$0xf]
    %v37 = vld [vmem:[%s0 + $0x48] sm:$0xff]
    %v38 = vld [vmem:[%s0 + $0x50] sm:$0xf]
    %v39 = vld [vmem:[%s0 + $0x54] sm:$0xff]
    %v40 = vld [vmem:[%s0 + $0x5c] sm:$0xf]
    %v41 = vld [vmem:[%s0 + $0x60] sm:$0xff]
    %v42 = vld [vmem:[%s0 + $0x68] sm:$0xf]
    %v43 = vld [vmem:[%s0 + $0x6c] sm:$0x33]
    %v44 = vld [vmem:[%s0 + $0x74] sm:$0x3]
    %v45 = vld [vmem:[%s1] sm:$0xff]
    %v46 = vld [vmem:[%s1 + $0x8] sm:$0xf]
    %v47 = vld [vmem:[%s1 + $0xc] sm:$0xff]
    %v48 = vld [vmem:[%s1 + $0x14] sm:$0xf]
    %v49 = vld [vmem:[%s2] sm:$0x3]
    %v60 = vunpack.c.l.b16 %v25
    %v61 = vunpack.c.h.b16 %v25
    %v62 = vunpack.c.l.b16 %v26
    %v63 = vunpack.c.l.b16 %v27
    %v64 = vunpack.c.h.b16 %v27
    %v65 = vunpack.c.l.b16 %v28
    %v66 = vunpack.c.l.b16 %v29
    %v67 = vunpack.c.h.b16 %v29
    %v68 = vunpack.c.l.b16 %v30
    %v69 = vunpack.c.l.b16 %v31
    %v70 = vunpack.c.h.b16 %v31
    %v71 = vunpack.c.l.b16 %v32
    %v72 = vunpack.c.l.b16 %v33
    %v73 = vunpack.c.h.b16 %v33
    %v74 = vunpack.c.l.b16 %v34
    %v75 = vpack.c.b16 %v63, %v60
    %v76 = vpack.c.b16 %v64, %v61
    %v77 = vpack.c.b16 %v65, %v62
    %v78 = vpack.c.b16 %v69, %v66
    %v79 = vpack.c.b16 %v70, %v67
    %v80 = vpack.c.b16 %v71, %v68
    %v81 = vpack.c.b16 %v72, %v72
    %v82 = vpack.c.b16 %v73, %v73
    %v83 = vpack.c.b16 %v74, %v74
    %vm90 = vcmask 293888
    %v92 = vsel %vm90, %v49, 0
    %vm94 = vcmask 1041408
    %v96 = vsel %vm94, %v81, 0
    %v99 = vsel %vm94, %v82, 0
    %v102 = vsel %vm94, %v83, 0
    %104 = vmatprep.subr.bf16.mxu0 %v76
    %105 = vmatpush1.bf16.msra.mxu0 %v75
    %106 = vmatprep.subr.bf16.mxu0 %v79
    %107 = vmatpush1.bf16.msra.mxu0 %v78
    %108 = vmatprep.subr.bf16.mxu0 %v99
    %109 = vmatpush1.bf16.msra.mxu0 %v96
    %110 = vmatprep.subr.bf16.mxu0 0
    %111 = vmatpush1.bf16.msra.mxu0 0
    %112 = vmatprep.subr.bf16.mxu0 0
    %113 = vmatpush1.bf16.msra.mxu0 0
    %114 = vmatprep.subr.bf16.mxu0 0
    %115 = vmatpush1.bf16.msra.mxu0 0
    %116 = vmatprep.subr.bf16.mxu0 0
    %117 = vmatpush1.bf16.msra.mxu0 0
    %118 = vmatprep.subr.bf16.mxu0 0
    %119 = vmatpush1.bf16.msra.mxu0 0
    %120 = vmatprep.subr.bf16.mxu0 0
    %121 = vmatpush1.bf16.msra.mxu0 0
    %122 = vmatprep.subr.bf16.mxu0 0
    %123 = vmatpush1.bf16.msra.mxu0 0
    %124 = vmatprep.subr.bf16.mxu0 0
    %125 = vmatpush1.bf16.msra.mxu0 0
    %126 = vmatprep.subr.bf16.mxu0 0
    %127 = vmatpush1.bf16.msra.mxu0 0
    %128 = vmatprep.subr.bf16.mxu0 0
    %129 = vmatpush1.bf16.msra.mxu0 0
    %130 = vmatprep.subr.bf16.mxu0 0
    %131 = vmatpush1.bf16.msra.mxu0 0
    %132 = vmatprep.subr.bf16.mxu0 0
    %133 = vmatpush1.bf16.msra.mxu0 0
    %134 = vmatprep.subr.bf16.mxu0 0
    %135 = vmatpush1.bf16.msra.mxu0 0
    %136 = vmatprep.mubr.bf16.mxu0 0
    %137 = vmatmul.mubr.bf16.gmra.mrb[0].mxu0 %v92
    %v138 = vpop.f32.mrb[0].mxu0
    %v139 = vadd.f32 0.0, %v138
    %v140 = vpop.f32.mrb[0].mxu0
    %v141 = vadd.f32 0.0, %v140
    %v142 = vpop.f32.mrb[0].mxu0
    %v143 = vpop.f32.mrb[0].mxu0
    %144 = vdwg.mxu0
    %145 = vmatprep.subr.bf16.mxu0 0
    %146 = vmatpush1.bf16.msra.mxu0 %v77
    %147 = vmatprep.subr.bf16.mxu0 0
    %148 = vmatpush1.bf16.msra.mxu0 %v80
    %149 = vmatprep.subr.bf16.mxu0 0
    %150 = vmatpush1.bf16.msra.mxu0 %v102
    %151 = vmatprep.subr.bf16.mxu0 0
    %152 = vmatpush1.bf16.msra.mxu0 0
    %153 = vmatprep.subr.bf16.mxu0 0
    %154 = vmatpush1.bf16.msra.mxu0 0
    %155 = vmatprep.subr.bf16.mxu0 0
    %156 = vmatpush1.bf16.msra.mxu0 0
    %157 = vmatprep.subr.bf16.mxu0 0
    %158 = vmatpush1.bf16.msra.mxu0 0
    %159 = vmatprep.subr.bf16.mxu0 0
    %160 = vmatpush1.bf16.msra.mxu0 0
    %161 = vmatprep.subr.bf16.mxu0 0
    %162 = vmatpush1.bf16.msra.mxu0 0
    %163 = vmatprep.subr.bf16.mxu0 0
    %164 = vmatpush1.bf16.msra.mxu0 0
    %165 = vmatprep.subr.bf16.mxu0 0
    %166 = vmatpush1.bf16.msra.mxu0 0
    %167 = vmatprep.subr.bf16.mxu0 0
    %168 = vmatpush1.bf16.msra.mxu0 0
    %169 = vmatprep.subr.bf16.mxu0 0
    %170 = vmatpush1.bf16.msra.mxu0 0
    %171 = vmatprep.subr.bf16.mxu0 0
    %172 = vmatpush1.bf16.msra.mxu0 0
    %173 = vmatprep.subr.bf16.mxu0 0
    %174 = vmatpush1.bf16.msra.mxu0 0
    %175 = vmatprep.subr.bf16.mxu0 0
    %176 = vmatpush1.bf16.msra.mxu0 0
    %177 = vmatprep.mubr.bf16.mxu0 0
    %178 = vmatmul.mubr.bf16.gmra.mrb[0].mxu0 %v92
    %v179 = vpop.f32.mrb[0].mxu0
    %v180 = vadd.f32 0.0, %v179
    %v181 = vpop.f32.mrb[0].mxu0
    %v182 = vpop.f32.mrb[0].mxu0
    %v183 = vpop.f32.mrb[0].mxu0
    %184 = vdwg.mxu0
    %v195 = vunpack.c.l.b16 %v35
    %v196 = vunpack.c.h.b16 %v35
    %v197 = vunpack.c.l.b16 %v36
    %v198 = vunpack.c.l.b16 %v37
    %v199 = vunpack.c.h.b16 %v37
    %v200 = vunpack.c.l.b16 %v38
    %v201 = vunpack.c.l.b16 %v39
    %v202 = vunpack.c.h.b16 %v39
    %v203 = vunpack.c.l.b16 %v40
    %v204 = vunpack.c.l.b16 %v41
    %v205 = vunpack.c.h.b16 %v41
    %v206 = vunpack.c.l.b16 %v42
    %v207 = vunpack.c.l.b16 %v43
    %v208 = vunpack.c.h.b16 %v43
    %v209 = vunpack.c.l.b16 %v44
    %v210 = vpack.c.b16 %v198, %v195
    %v211 = vpack.c.b16 %v199, %v196
    %v212 = vpack.c.b16 %v200, %v197
    %v213 = vpack.c.b16 %v204, %v201
    %v214 = vpack.c.b16 %v205, %v202
    %v215 = vpack.c.b16 %v206, %v203
    %v216 = vpack.c.b16 %v207, %v207
    %v217 = vpack.c.b16 %v208, %v208
    %v218 = vpack.c.b16 %v209, %v209
    %v226 = vsel %vm94, %v216, 0
    %v229 = vsel %vm94, %v217, 0
    %v232 = vsel %vm94, %v218, 0
    %234 = vmatprep.subr.bf16.mxu0 %v211
    %235 = vmatpush1.bf16.msra.mxu0 %v210
    %236 = vmatprep.subr.bf16.mxu0 %v214
    %237 = vmatpush1.bf16.msra.mxu0 %v213
    %238 = vmatprep.subr.bf16.mxu0 %v229
    %239 = vmatpush1.bf16.msra.mxu0 %v226
    %240 = vmatprep.subr.bf16.mxu0 0
    %241 = vmatpush1.bf16.msra.mxu0 0
    %242 = vmatprep.subr.bf16.mxu0 0
    %243 = vmatpush1.bf16.msra.mxu0 0
    %244 = vmatprep.subr.bf16.mxu0 0
    %245 = vmatpush1.bf16.msra.mxu0 0
    %246 = vmatprep.subr.bf16.mxu0 0
    %247 = vmatpush1.bf16.msra.mxu0 0
    %248 = vmatprep.subr.bf16.mxu0 0
    %249 = vmatpush1.bf16.msra.mxu0 0
    %250 = vmatprep.subr.bf16.mxu0 0
    %251 = vmatpush1.bf16.msra.mxu0 0
    %252 = vmatprep.subr.bf16.mxu0 0
    %253 = vmatpush1.bf16.msra.mxu0 0
    %254 = vmatprep.subr.bf16.mxu0 0
    %255 = vmatpush1.bf16.msra.mxu0 0
    %256 = vmatprep.subr.bf16.mxu0 0
    %257 = vmatpush1.bf16.msra.mxu0 0
    %258 = vmatprep.subr.bf16.mxu0 0
    %259 = vmatpush1.bf16.msra.mxu0 0
    %260 = vmatprep.subr.bf16.mxu0 0
    %261 = vmatpush1.bf16.msra.mxu0 0
    %262 = vmatprep.subr.bf16.mxu0 0
    %263 = vmatpush1.bf16.msra.mxu0 0
    %264 = vmatprep.subr.bf16.mxu0 0
    %265 = vmatpush1.bf16.msra.mxu0 0
    %266 = vmatprep.mubr.bf16.mxu0 0
    %267 = vmatmul.mubr.bf16.gmra.mrb[0].mxu0 %v92
    %v268 = vpop.f32.mrb[0].mxu0
    %v269 = vadd.f32 0.0, %v268
    %v270 = vpop.f32.mrb[0].mxu0
    %v271 = vadd.f32 0.0, %v270
    %v272 = vpop.f32.mrb[0].mxu0
    %v273 = vpop.f32.mrb[0].mxu0
    %274 = vdwg.mxu0
    %275 = vmatprep.subr.bf16.mxu0 0
    %276 = vmatpush1.bf16.msra.mxu0 %v212
    %277 = vmatprep.subr.bf16.mxu0 0
    %278 = vmatpush1.bf16.msra.mxu0 %v215
    %279 = vmatprep.subr.bf16.mxu0 0
    %280 = vmatpush1.bf16.msra.mxu0 %v232
    %281 = vmatprep.subr.bf16.mxu0 0
    %282 = vmatpush1.bf16.msra.mxu0 0
    %283 = vmatprep.subr.bf16.mxu0 0
    %284 = vmatpush1.bf16.msra.mxu0 0
    %285 = vmatprep.subr.bf16.mxu0 0
    %286 = vmatpush1.bf16.msra.mxu0 0
    %287 = vmatprep.subr.bf16.mxu0 0
    %288 = vmatpush1.bf16.msra.mxu0 0
    %289 = vmatprep.subr.bf16.mxu0 0
    %290 = vmatpush1.bf16.msra.mxu0 0
    %291 = vmatprep.subr.bf16.mxu0 0
    %292 = vmatpush1.bf16.msra.mxu0 0
    %293 = vmatprep.subr.bf16.mxu0 0
    %294 = vmatpush1.bf16.msra.mxu0 0
    %295 = vmatprep.subr.bf16.mxu0 0
    %296 = vmatpush1.bf16.msra.mxu0 0
    %297 = vmatprep.subr.bf16.mxu0 0
    %298 = vmatpush1.bf16.msra.mxu0 0
    %299 = vmatprep.subr.bf16.mxu0 0
    %300 = vmatpush1.bf16.msra.mxu0 0
    %301 = vmatprep.subr.bf16.mxu0 0
    %302 = vmatpush1.bf16.msra.mxu0 0
    %303 = vmatprep.subr.bf16.mxu0 0
    %304 = vmatpush1.bf16.msra.mxu0 0
    %305 = vmatprep.subr.bf16.mxu0 0
    %306 = vmatpush1.bf16.msra.mxu0 0
    %307 = vmatprep.mubr.bf16.mxu0 0
    %308 = vmatmul.mubr.bf16.gmra.mrb[0].mxu0 %v92
    %v309 = vpop.f32.mrb[0].mxu0
    %v310 = vadd.f32 0.0, %v309
    %v311 = vpop.f32.mrb[0].mxu0
    %v312 = vpop.f32.mrb[0].mxu0
    %v313 = vpop.f32.mrb[0].mxu0
    %314 = vdwg.mxu0
    %vm315 = vcmp.ge.f32.partialorder %v139, 0.0
    %vm316 = vcmp.ge.f32.partialorder %v141, 0.0
    %vm317 = vcmp.ge.f32.partialorder %v180, 0.0
    %vm318 = vcmp.ge.f32.partialorder %v269, 0.0
    %vm319 = vcmp.ge.f32.partialorder %v271, 0.0
    %vm320 = vcmp.ge.f32.partialorder %v310, 0.0
    %v321 = vmul.f32 %v139, 0.01
    %v322 = vmul.f32 %v141, 0.01
    %v323 = vmul.f32 %v180, 0.01
    %v324 = vmul.f32 %v269, 0.01
    %v325 = vmul.f32 %v271, 0.01
    %v326 = vmul.f32 %v310, 0.01
    %v327 = vsel %vm315, %v139, %v321
    %v328 = vsel %vm316, %v141, %v322
    %v329 = vsel %vm317, %v180, %v323
    %v330 = vsel %vm318, %v269, %v324
    %v331 = vsel %vm319, %v271, %v325
    %v332 = vsel %vm320, %v310, %v326
    %v333 = vpack.c.bf16 %v327, %v327
    %v334 = vpack.c.bf16 %v328, %v328
    %v335 = vpack.c.bf16 %v329, %v329
    %v336 = vpack.c.bf16 %v330, %v330
    %v337 = vpack.c.bf16 %v331, %v331
    %v338 = vpack.c.bf16 %v332, %v332
    %v345 = vunpack.c.l.b16 %v333
    %v346 = vunpack.c.l.b16 %v334
    %v347 = vunpack.c.l.b16 %v335
    %v348 = vunpack.c.l.b16 %v336
    %v349 = vunpack.c.l.b16 %v337
    %v350 = vunpack.c.l.b16 %v338
    %v351 = vpack.c.b16 %v346, %v345
    %v352 = vpack.c.b16 %v347, %v347
    %v353 = vpack.c.b16 %v349, %v348
    %v354 = vpack.c.b16 %v350, %v350
    %359 = vst [vmem:[#allocation2] sm:$0x33] %v351
    %vm360 = vcmask 238592
    %361 = vst.msk [vmem:[#allocation2 + $0x8] sm:$0x3] %vm360, %v352
    %362 = vst [vmem:[#allocation2 + $0x3c] sm:$0x33] %v353
    %363 = vst.msk [vmem:[#allocation2 + $0x44] sm:$0x3] %vm360, %v354
    %v364 = vrot.slane %v351, 6
    %v365 = vrot.slane %v352, 6
    %v366 = vrot.slane %v353, 6
    %v367 = vrot.slane %v354, 6
    %368 = vrot.lane.b32.xlu0 %v364, 127
    %v369 = vpop.permute.xlu0 %368
    %370 = vrot.lane.b32.xlu0 %v365, 127
    %v371 = vpop.permute.xlu0 %370
    %372 = vrot.lane.b32.xlu0 %v366, 127
    %v373 = vpop.permute.xlu0 %372
    %374 = vrot.lane.b32.xlu0 %v367, 127
    %v375 = vpop.permute.xlu0 %374
    %v376 = vrot.slane %v369, 4
    %v377 = vrot.slane %v371, 4
    %v378 = vrot.slane %v373, 4
    %v379 = vrot.slane %v375, 4
    %vm380 = vcmask 1043456
    %v381 = vsel %vm380, %v376, %v377
    %vm382 = vcmask 1039360
    %v383 = vsel %vm382, %v369, %v381
    %v384 = vsel %vm380, %v378, %v379
    %v385 = vsel %vm382, %v373, %v384
    %390 = vst [vmem:[#allocation2] sm:$0xcc] %v383
    %vm391 = vcmask 240642
    %392 = vst.msk [vmem:[#allocation2 + $0x8] sm:$0xc] %vm391, %v371
    %393 = vst [vmem:[#allocation2 + $0x3c] sm:$0xcc] %v385
    %394 = vst.msk [vmem:[#allocation2 + $0x44] sm:$0xc] %vm391, %v375
    %395 = vrot.lane.b32.xlu0 %v351, 126
    %v396 = vpop.permute.xlu0 %395
    %397 = vrot.lane.b32.xlu0 %v352, 126
    %v398 = vpop.permute.xlu0 %397
    %399 = vrot.lane.b32.xlu0 %v353, 126
    %v400 = vpop.permute.xlu0 %399
    %401 = vrot.lane.b32.xlu0 %v354, 126
    %v402 = vpop.permute.xlu0 %401
    %v403 = vrot.slane %v396, 4
    %v404 = vrot.slane %v398, 4
    %v405 = vrot.slane %v400, 4
    %v406 = vrot.slane %v402, 4
    %v407 = vsel %vm380, %v403, %v404
    %vm408 = vcmask 1031168
    %v409 = vsel %vm408, %v396, %v407
    %v410 = vsel %vm380, %v405, %v406
    %v411 = vsel %vm408, %v400, %v410
    %416 = vst [vmem:[#allocation2 + $0xc] sm:$0x33] %v409
    %417 = vst.msk [vmem:[#allocation2 + $0x14] sm:$0x3] %vm360, %v398
    %418 = vst [vmem:[#allocation2 + $0x48] sm:$0x33] %v411
    %419 = vst.msk [vmem:[#allocation2 + $0x50] sm:$0x3] %vm360, %v402
    %420 = vrot.lane.b32.xlu0 %v364, 110
    %v421 = vpop.permute.xlu0 %420
    %422 = vrot.lane.b32.xlu0 %v365, 110
    %v423 = vpop.permute.xlu0 %422
    %424 = vrot.lane.b32.xlu0 %v366, 110
    %v425 = vpop.permute.xlu0 %424
    %426 = vrot.lane.b32.xlu0 %v367, 110
    %v427 = vpop.permute.xlu0 %426
    %v428 = vrot.slane %v421, 4
    %v429 = vrot.slane %v423, 4
    %v430 = vrot.slane %v425, 4
    %v431 = vrot.slane %v427, 4
    %v432 = vsel %vm380, %v428, %v429
    %vm433 = vcmask 900096
    %v434 = vsel %vm433, %v421, %v432
    %v435 = vsel %vm380, %v430, %v431
    %v436 = vsel %vm433, %v425, %v435
    %441 = vst [vmem:[#allocation2 + $0xc] sm:$0xcc] %v434
    %442 = vst.msk [vmem:[#allocation2 + $0x14] sm:$0xc] %vm391, %v423
    %443 = vst [vmem:[#allocation2 + $0x48] sm:$0xcc] %v436
    %444 = vst.msk [vmem:[#allocation2 + $0x50] sm:$0xc] %vm391, %v427
    %445 = vrot.lane.b32.xlu0 %v351, 109
    %v446 = vpop.permute.xlu0 %445
    %447 = vrot.lane.b32.xlu0 %v352, 109
    %v448 = vpop.permute.xlu0 %447
    %449 = vrot.lane.b32.xlu0 %v353, 109
    %v450 = vpop.permute.xlu0 %449
    %451 = vrot.lane.b32.xlu0 %v354, 109
    %v452 = vpop.permute.xlu0 %451
    %v453 = vrot.slane %v446, 4
    %v454 = vrot.slane %v448, 4
    %v455 = vrot.slane %v450, 4
    %v456 = vrot.slane %v452, 4
    %v457 = vsel %vm380, %v453, %v454
    %vm458 = vcmask 891904
    %v459 = vsel %vm458, %v446, %v457
    %v460 = vsel %vm380, %v455, %v456
    %v461 = vsel %vm458, %v450, %v460
    %466 = vst [vmem:[#allocation2 + $0x18] sm:$0x33] %v459
    %467 = vst.msk [vmem:[#allocation2 + $0x20] sm:$0x3] %vm360, %v448
    %468 = vst [vmem:[#allocation2 + $0x54] sm:$0x33] %v461
    %469 = vst.msk [vmem:[#allocation2 + $0x5c] sm:$0x3] %vm360, %v452
    %470 = vrot.lane.b32.xlu0 %v364, 108
    %v471 = vpop.permute.xlu0 %470
    %472 = vrot.lane.b32.xlu0 %v365, 108
    %v473 = vpop.permute.xlu0 %472
    %474 = vrot.lane.b32.xlu0 %v366, 108
    %v475 = vpop.permute.xlu0 %474
    %476 = vrot.lane.b32.xlu0 %v367, 108
    %v477 = vpop.permute.xlu0 %476
    %v478 = vrot.slane %v471, 4
    %v479 = vrot.slane %v473, 4
    %v480 = vrot.slane %v475, 4
    %v481 = vrot.slane %v477, 4
    %v482 = vsel %vm380, %v478, %v479
    %vm483 = vcmask 883712
    %v484 = vsel %vm483, %v471, %v482
    %v485 = vsel %vm380, %v480, %v481
    %v486 = vsel %vm483, %v475, %v485
    %491 = vst [vmem:[#allocation2 + $0x18] sm:$0xcc] %v484
    %492 = vst.msk [vmem:[#allocation2 + $0x20] sm:$0xc] %vm391, %v473
    %493 = vst [vmem:[#allocation2 + $0x54] sm:$0xcc] %v486
    %494 = vst.msk [vmem:[#allocation2 + $0x5c] sm:$0xc] %vm391, %v477
    %495 = vrot.lane.b32.xlu0 %v351, 92
    %v496 = vpop.permute.xlu0 %495
    %497 = vrot.lane.b32.xlu0 %v352, 92
    %v498 = vpop.permute.xlu0 %497
    %499 = vrot.lane.b32.xlu0 %v353, 92
    %v500 = vpop.permute.xlu0 %499
    %501 = vrot.lane.b32.xlu0 %v354, 92
    %v502 = vpop.permute.xlu0 %501
    %v503 = vrot.slane %v496, 4
    %v504 = vrot.slane %v498, 4
    %v505 = vrot.slane %v500, 4
    %v506 = vrot.slane %v502, 4
    %v507 = vsel %vm380, %v503, %v504
    %vm508 = vcmask 752640
    %v509 = vsel %vm508, %v496, %v507
    %v510 = vsel %vm380, %v505, %v506
    %v511 = vsel %vm508, %v500, %v510
    %516 = vst [vmem:[#allocation2 + $0x24] sm:$0x33] %v509
    %517 = vst.msk [vmem:[#allocation2 + $0x2c] sm:$0x3] %vm360, %v498
    %518 = vst [vmem:[#allocation2 + $0x60] sm:$0x33] %v511
    %519 = vst.msk [vmem:[#allocation2 + $0x68] sm:$0x3] %vm360, %v502
    %520 = vrot.lane.b32.xlu0 %v364, 91
    %v521 = vpop.permute.xlu0 %520
    %522 = vrot.lane.b32.xlu0 %v365, 91
    %v523 = vpop.permute.xlu0 %522
    %524 = vrot.lane.b32.xlu0 %v366, 91
    %v525 = vpop.permute.xlu0 %524
    %526 = vrot.lane.b32.xlu0 %v367, 91
    %v527 = vpop.permute.xlu0 %526
    %v528 = vrot.slane %v521, 4
    %v529 = vrot.slane %v523, 4
    %v530 = vrot.slane %v525, 4
    %v531 = vrot.slane %v527, 4
    %v532 = vsel %vm380, %v528, %v529
    %vm533 = vcmask 744448
    %v534 = vsel %vm533, %v521, %v532
    %v535 = vsel %vm380, %v530, %v531
    %v536 = vsel %vm533, %v525, %v535
    %541 = vst [vmem:[#allocation2 + $0x24] sm:$0xcc] %v534
    %542 = vst.msk [vmem:[#allocation2 + $0x2c] sm:$0xc] %vm391, %v523
    %543 = vst [vmem:[#allocation2 + $0x60] sm:$0xcc] %v536
    %544 = vst.msk [vmem:[#allocation2 + $0x68] sm:$0xc] %vm391, %v527
    %545 = vrot.lane.b32.xlu0 %v351, 90
    %v546 = vpop.permute.xlu0 %545
    %547 = vrot.lane.b32.xlu0 %v352, 90
    %v548 = vpop.permute.xlu0 %547
    %549 = vrot.lane.b32.xlu0 %v353, 90
    %v550 = vpop.permute.xlu0 %549
    %551 = vrot.lane.b32.xlu0 %v354, 90
    %v552 = vpop.permute.xlu0 %551
    %v553 = vrot.slane %v546, 4
    %v554 = vrot.slane %v548, 4
    %v555 = vrot.slane %v550, 4
    %v556 = vrot.slane %v552, 4
    %v557 = vsel %vm380, %v553, %v554
    %vm558 = vcmask 736256
    %v559 = vsel %vm558, %v546, %v557
    %v560 = vsel %vm380, %v555, %v556
    %v561 = vsel %vm558, %v550, %v560
    %566 = vst [vmem:[#allocation2 + $0x30] sm:$0x33] %v559
    %567 = vst.msk [vmem:[#allocation2 + $0x38] sm:$0x3] %vm360, %v548
    %568 = vst [vmem:[#allocation2 + $0x6c] sm:$0x33] %v561
    %569 = vst.msk [vmem:[#allocation2 + $0x74] sm:$0x3] %vm360, %v552
    %v570 = vld [vmem:[%s3] sm:$0x3]
    %v571 = vld [vmem:[#allocation2] sm:$0xff]
    %v572 = vld [vmem:[#allocation2 + $0x8] sm:$0xf]
    %v573 = vld [vmem:[#allocation2 + $0xc] sm:$0xff]
    %v574 = vld [vmem:[#allocation2 + $0x14] sm:$0xf]
    %v575 = vld [vmem:[#allocation2 + $0x18] sm:$0xff]
    %v576 = vld [vmem:[#allocation2 + $0x20] sm:$0xf]
    %v577 = vld [vmem:[#allocation2 + $0x24] sm:$0xff]
    %v578 = vld [vmem:[#allocation2 + $0x2c] sm:$0xf]
    %v579 = vld [vmem:[#allocation2 + $0x30] sm:$0x33]
    %v580 = vld [vmem:[#allocation2 + $0x38] sm:$0x3]
    %v581 = vld [vmem:[#allocation2 + $0x3c] sm:$0xff]
    %v582 = vld [vmem:[#allocation2 + $0x44] sm:$0xf]
    %v583 = vld [vmem:[#allocation2 + $0x48] sm:$0xff]
    %v584 = vld [vmem:[#allocation2 + $0x50] sm:$0xf]
    %v585 = vld [vmem:[#allocation2 + $0x54] sm:$0xff]
    %v586 = vld [vmem:[#allocation2 + $0x5c] sm:$0xf]
    %v587 = vld [vmem:[#allocation2 + $0x60] sm:$0xff]
    %v588 = vld [vmem:[#allocation2 + $0x68] sm:$0xf]
    %v589 = vld [vmem:[#allocation2 + $0x6c] sm:$0x33]
    %v590 = vld [vmem:[#allocation2 + $0x74] sm:$0x3]
    %v601 = vunpack.c.l.b16 %v571
    %v602 = vunpack.c.h.b16 %v571
    %v603 = vunpack.c.l.b16 %v572
    %v604 = vunpack.c.l.b16 %v573
    %v605 = vunpack.c.h.b16 %v573
    %v606 = vunpack.c.l.b16 %v574
    %v607 = vunpack.c.l.b16 %v575
    %v608 = vunpack.c.h.b16 %v575
    %v609 = vunpack.c.l.b16 %v576
    %v610 = vunpack.c.l.b16 %v577
    %v611 = vunpack.c.h.b16 %v577
    %v612 = vunpack.c.l.b16 %v578
    %v613 = vunpack.c.l.b16 %v579
    %v614 = vunpack.c.h.b16 %v579
    %v615 = vunpack.c.l.b16 %v580
    %v616 = vpack.c.b16 %v604, %v601
    %v617 = vpack.c.b16 %v605, %v602
    %v618 = vpack.c.b16 %v606, %v603
    %v619 = vpack.c.b16 %v610, %v607
    %v620 = vpack.c.b16 %v611, %v608
    %v621 = vpack.c.b16 %v612, %v609
    %v622 = vpack.c.b16 %v613, %v613
    %v623 = vpack.c.b16 %v614, %v614
    %v624 = vpack.c.b16 %v615, %v615
    %v632 = vcombine.high %v45, %v45
    %v635 = vsel %vm90, %v570, 0
    %v638 = vsel %vm94, %v622, 0
    %v641 = vsel %vm94, %v623, 0
    %v644 = vsel %vm94, %v624, 0
    %646 = vmatprep.subr.bf16.mxu0 %v617
    %647 = vmatpush1.bf16.msra.mxu0 %v616
    %648 = vmatprep.subr.bf16.mxu0 %v620
    %649 = vmatpush1.bf16.msra.mxu0 %v619
    %650 = vmatprep.subr.bf16.mxu0 %v641
    %651 = vmatpush1.bf16.msra.mxu0 %v638
    %652 = vmatprep.subr.bf16.mxu0 0
    %653 = vmatpush1.bf16.msra.mxu0 0
    %654 = vmatprep.subr.bf16.mxu0 0
    %655 = vmatpush1.bf16.msra.mxu0 0
    %656 = vmatprep.subr.bf16.mxu0 0
    %657 = vmatpush1.bf16.msra.mxu0 0
    %658 = vmatprep.subr.bf16.mxu0 0
    %659 = vmatpush1.bf16.msra.mxu0 0
    %660 = vmatprep.subr.bf16.mxu0 0
    %661 = vmatpush1.bf16.msra.mxu0 0
    %662 = vmatprep.subr.bf16.mxu0 0
    %663 = vmatpush1.bf16.msra.mxu0 0
    %664 = vmatprep.subr.bf16.mxu0 0
    %665 = vmatpush1.bf16.msra.mxu0 0
    %666 = vmatprep.subr.bf16.mxu0 0
    %667 = vmatpush1.bf16.msra.mxu0 0
    %668 = vmatprep.subr.bf16.mxu0 0
    %669 = vmatpush1.bf16.msra.mxu0 0
    %670 = vmatprep.subr.bf16.mxu0 0
    %671 = vmatpush1.bf16.msra.mxu0 0
    %672 = vmatprep.subr.bf16.mxu0 0
    %673 = vmatpush1.bf16.msra.mxu0 0
    %674 = vmatprep.subr.bf16.mxu0 0
    %675 = vmatpush1.bf16.msra.mxu0 0
    %676 = vmatprep.subr.bf16.mxu0 0
    %677 = vmatpush1.bf16.msra.mxu0 0
    %678 = vmatprep.mubr.bf16.mxu0 0
    %679 = vmatmul.mubr.bf16.gmra.mrb[0].mxu0 %v635
    %v680 = vpop.f32.mrb[0].mxu0
    %v681 = vadd.f32 %v45, %v680
    %v682 = vpop.f32.mrb[0].mxu0
    %v683 = vadd.f32 %v632, %v682
    %v684 = vpop.f32.mrb[0].mxu0
    %v685 = vpop.f32.mrb[0].mxu0
    %686 = vdwg.mxu0
    %687 = vmatprep.subr.bf16.mxu0 0
    %688 = vmatpush1.bf16.msra.mxu0 %v618
    %689 = vmatprep.subr.bf16.mxu0 0
    %690 = vmatpush1.bf16.msra.mxu0 %v621
    %691 = vmatprep.subr.bf16.mxu0 0
    %692 = vmatpush1.bf16.msra.mxu0 %v644
    %693 = vmatprep.subr.bf16.mxu0 0
    %694 = vmatpush1.bf16.msra.mxu0 0
    %695 = vmatprep.subr.bf16.mxu0 0
    %696 = vmatpush1.bf16.msra.mxu0 0
    %697 = vmatprep.subr.bf16.mxu0 0
    %698 = vmatpush1.bf16.msra.mxu0 0
    %699 = vmatprep.subr.bf16.mxu0 0
    %700 = vmatpush1.bf16.msra.mxu0 0
    %701 = vmatprep.subr.bf16.mxu0 0
    %702 = vmatpush1.bf16.msra.mxu0 0
    %703 = vmatprep.subr.bf16.mxu0 0
    %704 = vmatpush1.bf16.msra.mxu0 0
    %705 = vmatprep.subr.bf16.mxu0 0
    %706 = vmatpush1.bf16.msra.mxu0 0
    %707 = vmatprep.subr.bf16.mxu0 0
    %708 = vmatpush1.bf16.msra.mxu0 0
    %709 = vmatprep.subr.bf16.mxu0 0
    %710 = vmatpush1.bf16.msra.mxu0 0
    %711 = vmatprep.subr.bf16.mxu0 0
    %712 = vmatpush1.bf16.msra.mxu0 0
    %713 = vmatprep.subr.bf16.mxu0 0
    %714 = vmatpush1.bf16.msra.mxu0 0
    %715 = vmatprep.subr.bf16.mxu0 0
    %716 = vmatpush1.bf16.msra.mxu0 0
    %717 = vmatprep.subr.bf16.mxu0 0
    %718 = vmatpush1.bf16.msra.mxu0 0
    %719 = vmatprep.mubr.bf16.mxu0 0
    %720 = vmatmul.mubr.bf16.gmra.mrb[0].mxu0 %v635
    %v721 = vpop.f32.mrb[0].mxu0
    %v722 = vadd.f32 %v46, %v721
    %v723 = vpop.f32.mrb[0].mxu0
    %v724 = vpop.f32.mrb[0].mxu0
    %v725 = vpop.f32.mrb[0].mxu0
    %726 = vdwg.mxu0
    %v737 = vunpack.c.l.b16 %v581
    %v738 = vunpack.c.h.b16 %v581
    %v739 = vunpack.c.l.b16 %v582
    %v740 = vunpack.c.l.b16 %v583
    %v741 = vunpack.c.h.b16 %v583
    %v742 = vunpack.c.l.b16 %v584
    %v743 = vunpack.c.l.b16 %v585
    %v744 = vunpack.c.h.b16 %v585
    %v745 = vunpack.c.l.b16 %v586
    %v746 = vunpack.c.l.b16 %v587
    %v747 = vunpack.c.h.b16 %v587
    %v748 = vunpack.c.l.b16 %v588
    %v749 = vunpack.c.l.b16 %v589
    %v750 = vunpack.c.h.b16 %v589
    %v751 = vunpack.c.l.b16 %v590
    %v752 = vpack.c.b16 %v740, %v737
    %v753 = vpack.c.b16 %v741, %v738
    %v754 = vpack.c.b16 %v742, %v739
    %v755 = vpack.c.b16 %v746, %v743
    %v756 = vpack.c.b16 %v747, %v744
    %v757 = vpack.c.b16 %v748, %v745
    %v758 = vpack.c.b16 %v749, %v749
    %v759 = vpack.c.b16 %v750, %v750
    %v760 = vpack.c.b16 %v751, %v751
    %v768 = vcombine.high %v47, %v47
    %v771 = vsel %vm94, %v758, 0
    %v774 = vsel %vm94, %v759, 0
    %v777 = vsel %vm94, %v760, 0
    %779 = vmatprep.subr.bf16.mxu0 %v753
    %780 = vmatpush1.bf16.msra.mxu0 %v752
    %781 = vmatprep.subr.bf16.mxu0 %v756
    %782 = vmatpush1.bf16.msra.mxu0 %v755
    %783 = vmatprep.subr.bf16.mxu0 %v774
    %784 = vmatpush1.bf16.msra.mxu0 %v771
    %785 = vmatprep.subr.bf16.mxu0 0
    %786 = vmatpush1.bf16.msra.mxu0 0
    %787 = vmatprep.subr.bf16.mxu0 0
    %788 = vmatpush1.bf16.msra.mxu0 0
    %789 = vmatprep.subr.bf16.mxu0 0
    %790 = vmatpush1.bf16.msra.mxu0 0
    %791 = vmatprep.subr.bf16.mxu0 0
    %792 = vmatpush1.bf16.msra.mxu0 0
    %793 = vmatprep.subr.bf16.mxu0 0
    %794 = vmatpush1.bf16.msra.mxu0 0
    %795 = vmatprep.subr.bf16.mxu0 0
    %796 = vmatpush1.bf16.msra.mxu0 0
    %797 = vmatprep.subr.bf16.mxu0 0
    %798 = vmatpush1.bf16.msra.mxu0 0
    %799 = vmatprep.subr.bf16.mxu0 0
    %800 = vmatpush1.bf16.msra.mxu0 0
    %801 = vmatprep.subr.bf16.mxu0 0
    %802 = vmatpush1.bf16.msra.mxu0 0
    %803 = vmatprep.subr.bf16.mxu0 0
    %804 = vmatpush1.bf16.msra.mxu0 0
    %805 = vmatprep.subr.bf16.mxu0 0
    %806 = vmatpush1.bf16.msra.mxu0 0
    %807 = vmatprep.subr.bf16.mxu0 0
    %808 = vmatpush1.bf16.msra.mxu0 0
    %809 = vmatprep.subr.bf16.mxu0 0
    %810 = vmatpush1.bf16.msra.mxu0 0
    %811 = vmatprep.mubr.bf16.mxu0 0
    %812 = vmatmul.mubr.bf16.gmra.mrb[0].mxu0 %v635
    %v813 = vpop.f32.mrb[0].mxu0
    %v814 = vadd.f32 %v47, %v813
    %v815 = vpop.f32.mrb[0].mxu0
    %v816 = vadd.f32 %v768, %v815
    %v817 = vpop.f32.mrb[0].mxu0
    %v818 = vpop.f32.mrb[0].mxu0
    %819 = vdwg.mxu0
    %820 = vmatprep.subr.bf16.mxu0 0
    %821 = vmatpush1.bf16.msra.mxu0 %v754
    %822 = vmatprep.subr.bf16.mxu0 0
    %823 = vmatpush1.bf16.msra.mxu0 %v757
    %824 = vmatprep.subr.bf16.mxu0 0
    %825 = vmatpush1.bf16.msra.mxu0 %v777
    %826 = vmatprep.subr.bf16.mxu0 0
    %827 = vmatpush1.bf16.msra.mxu0 0
    %828 = vmatprep.subr.bf16.mxu0 0
    %829 = vmatpush1.bf16.msra.mxu0 0
    %830 = vmatprep.subr.bf16.mxu0 0
    %831 = vmatpush1.bf16.msra.mxu0 0
    %832 = vmatprep.subr.bf16.mxu0 0
    %833 = vmatpush1.bf16.msra.mxu0 0
    %834 = vmatprep.subr.bf16.mxu0 0
    %835 = vmatpush1.bf16.msra.mxu0 0
    %836 = vmatprep.subr.bf16.mxu0 0
    %837 = vmatpush1.bf16.msra.mxu0 0
    %838 = vmatprep.subr.bf16.mxu0 0
    %839 = vmatpush1.bf16.msra.mxu0 0
    %840 = vmatprep.subr.bf16.mxu0 0
    %841 = vmatpush1.bf16.msra.mxu0 0
    %842 = vmatprep.subr.bf16.mxu0 0
    %843 = vmatpush1.bf16.msra.mxu0 0
    %844 = vmatprep.subr.bf16.mxu0 0
    %845 = vmatpush1.bf16.msra.mxu0 0
    %846 = vmatprep.subr.bf16.mxu0 0
    %847 = vmatpush1.bf16.msra.mxu0 0
    %848 = vmatprep.subr.bf16.mxu0 0
    %849 = vmatpush1.bf16.msra.mxu0 0
    %850 = vmatprep.subr.bf16.mxu0 0
    %851 = vmatpush1.bf16.msra.mxu0 0
    %852 = vmatprep.mubr.bf16.mxu0 0
    %853 = vmatmul.mubr.bf16.gmra.mrb[0].mxu0 %v635
    %v854 = vpop.f32.mrb[0].mxu0
    %v855 = vadd.f32 %v48, %v854
    %v856 = vpop.f32.mrb[0].mxu0
    %v857 = vpop.f32.mrb[0].mxu0
    %v858 = vpop.f32.mrb[0].mxu0
    %859 = vdwg.mxu0
    %vm860 = vcmp.ge.f32.partialorder %v681, 0.0
    %vm861 = vcmp.ge.f32.partialorder %v683, 0.0
    %vm862 = vcmp.ge.f32.partialorder %v722, 0.0
    %vm863 = vcmp.ge.f32.partialorder %v814, 0.0
    %vm864 = vcmp.ge.f32.partialorder %v816, 0.0
    %vm865 = vcmp.ge.f32.partialorder %v855, 0.0
    %v866 = vmul.f32 %v681, 0.01
    %v867 = vmul.f32 %v683, 0.01
    %v868 = vmul.f32 %v722, 0.01
    %v869 = vmul.f32 %v814, 0.01
    %v870 = vmul.f32 %v816, 0.01
    %v871 = vmul.f32 %v855, 0.01
    %v872 = vsel %vm860, %v681, %v866
    %v873 = vsel %vm861, %v683, %v867
    %v874 = vsel %vm862, %v722, %v868
    %v875 = vsel %vm863, %v814, %v869
    %v876 = vsel %vm864, %v816, %v870
    %v877 = vsel %vm865, %v855, %v871
    %v878 = vpack.c.bf16 %v872, %v872
    %v879 = vpack.c.bf16 %v873, %v873
    %v880 = vpack.c.bf16 %v874, %v874
    %v881 = vpack.c.bf16 %v875, %v875
    %v882 = vpack.c.bf16 %v876, %v876
    %v883 = vpack.c.bf16 %v877, %v877
    %v890 = vcombine.low %v878, %v879
    %v892 = vunpack.c.l.s4 1966171168
    %v893 = vunpack.c.0.s8 %v892
    %v894 = vlaneseq
    %v895 = vshrl.u32 %v894, 7
    %v896 = vsub.s32 %v893, %v895
    %v897 = vrot.slane %v890, %v896
    %v899 = vunpack.c.l.s4 1966171168
    %v900 = vunpack.c.0.s8 %v899
    %v901 = vlaneseq
    %v902 = vshrl.u32 %v901, 7
    %v903 = vsub.s32 %v900, %v902
    %v904 = vrot.slane %v880, %v903
    %v905 = vcombine.low %v897, %v904
    %v907 = vunpack.c.l.s4 1966171168
    %v908 = vunpack.c.0.s8 %v907
    %v909 = vlaneseq
    %v910 = vshrl.u32 %v909, 7
    %v911 = vsub.s32 %v908, %v910
    %v912 = vrot.slane %v905, %v911
    %v913 = vcombine.low %v881, %v882
    %v915 = vunpack.c.l.s4 1966171168
    %v916 = vunpack.c.0.s8 %v915
    %v917 = vlaneseq
    %v918 = vshrl.u32 %v917, 7
    %v919 = vsub.s32 %v916, %v918
    %v920 = vrot.slane %v913, %v919
    %v922 = vunpack.c.l.s4 1966171168
    %v923 = vunpack.c.0.s8 %v922
    %v924 = vlaneseq
    %v925 = vshrl.u32 %v924, 7
    %v926 = vsub.s32 %v923, %v925
    %v927 = vrot.slane %v883, %v926
    %v928 = vcombine.low %v920, %v927
    %v930 = vunpack.c.l.s4 1966171168
    %v931 = vunpack.c.0.s8 %v930
    %v932 = vlaneseq
    %v933 = vshrl.u32 %v932, 7
    %v934 = vsub.s32 %v931, %v933
    %v935 = vrot.slane %v928, %v934
    %v937 = vunpack.c.l.s4 1935823168
    %v938 = vunpack.c.0.s8 %v937
    %v939 = vlaneseq
    %v940 = vshrl.u32 %v939, 7
    %v941 = vsub.s32 %v938, %v940
    %v942 = vrot.slane %v912, %v941
    %v943 = vcombine.high %v942, %v942
    %v945 = vunpack.c.l.s4 1935823168
    %v946 = vunpack.c.0.s8 %v945
    %v947 = vlaneseq
    %v948 = vshrl.u32 %v947, 7
    %v949 = vsub.s32 %v946, %v948
    %v950 = vrot.slane %v942, %v949
    %v952 = vunpack.c.l.s4 1935823168
    %v953 = vunpack.c.0.s8 %v952
    %v954 = vlaneseq
    %v955 = vshrl.u32 %v954, 7
    %v956 = vsub.s32 %v953, %v955
    %v957 = vrot.slane %v943, %v956
    %v959 = vunpack.c.l.s4 1935823168
    %v960 = vunpack.c.0.s8 %v959
    %v961 = vlaneseq
    %v962 = vshrl.u32 %v961, 7
    %v963 = vsub.s32 %v960, %v962
    %v964 = vrot.slane %v935, %v963
    %v965 = vcombine.high %v964, %v964
    %v967 = vunpack.c.l.s4 1935823168
    %v968 = vunpack.c.0.s8 %v967
    %v969 = vlaneseq
    %v970 = vshrl.u32 %v969, 7
    %v971 = vsub.s32 %v968, %v970
    %v972 = vrot.slane %v964, %v971
    %v974 = vunpack.c.l.s4 1935823168
    %v975 = vunpack.c.0.s8 %v974
    %v976 = vlaneseq
    %v977 = vshrl.u32 %v976, 7
    %v978 = vsub.s32 %v975, %v977
    %v979 = vrot.slane %v965, %v978
    %v980 = vunpack.c.l.b16 %v950
    %v981 = vunpack.c.h.b16 %v950
    %v982 = vunpack.c.l.b16 %v957
    %v983 = vunpack.c.l.b16 %v972
    %v984 = vunpack.c.h.b16 %v972
    %v985 = vunpack.c.l.b16 %v979
    %v986 = vrot.slane %v983, 7
    %vm987 = vcmask 1041409
    %v988 = vsel %vm987, %v986, %v980
    %v989 = vrot.slane %v984, 7
    %v990 = vsel %vm987, %v989, %v981
    %v991 = vrot.slane %v985, 7
    %v992 = vsel %vm987, %v991, %v982
    %v993 = vpack.c.b16 %v990, %v988
    %v994 = vpack.c.b16 %v992, %v992
    %v996 = vunpack.c.l.s4 1966171168
    %v997 = vunpack.c.0.s8 %v996
    %v998 = vlaneseq
    %v999 = vshrl.u32 %v998, 7
    %v1000 = vsub.s32 %v997, %v999
    %v1001 = vrot.slane %v993, %v1000
    %v1003 = vunpack.c.l.s4 1966171168
    %v1004 = vunpack.c.0.s8 %v1003
    %v1005 = vlaneseq
    %v1006 = vshrl.u32 %v1005, 7
    %v1007 = vsub.s32 %v1004, %v1006
    %v1008 = vrot.slane %v994, %v1007
    %v1009 = vcombine.low %v1001, %v1008
    %v1011 = vunpack.c.l.s4 1966171168
    %v1012 = vunpack.c.0.s8 %v1011
    %v1013 = vlaneseq
    %v1014 = vshrl.u32 %v1013, 7
    %v1015 = vsub.s32 %v1012, %v1014
    %v1016 = vrot.slane %v1009, %v1015
    %vm1018 = vcmask 1040384
    %vm1019 = vmor %vm987, %vm1018
    %vm1020 = vcmask 239618
    %vm1021 = vmor %vm1020, %vm1019
    %1022 = vst.msk [vmem:[#allocation3] sm:$0x7] %vm1021, %v1016
    %v1023 = vrot.slane %v980, 1
    %v1024 = vsel %vm987, %v983, %v1023
    %v1025 = vrot.slane %v981, 1
    %v1026 = vsel %vm987, %v984, %v1025
    %v1027 = vrot.slane %v982, 1
    %v1028 = vsel %vm987, %v985, %v1027
    %v1029 = vpack.c.b16 %v1026, %v1024
    %v1030 = vpack.c.b16 %v1028, %v1028
    %v1032 = vunpack.c.l.s4 1966171168
    %v1033 = vunpack.c.0.s8 %v1032
    %v1034 = vlaneseq
    %v1035 = vshrl.u32 %v1034, 7
    %v1036 = vsub.s32 %v1033, %v1035
    %v1037 = vrot.slane %v1029, %v1036
    %v1039 = vunpack.c.l.s4 1966171168
    %v1040 = vunpack.c.0.s8 %v1039
    %v1041 = vlaneseq
    %v1042 = vshrl.u32 %v1041, 7
    %v1043 = vsub.s32 %v1040, %v1042
    %v1044 = vrot.slane %v1030, %v1043
    %v1045 = vcombine.low %v1037, %v1044
    %v1047 = vunpack.c.l.s4 1966171168
    %v1048 = vunpack.c.0.s8 %v1047
    %v1049 = vlaneseq
    %v1050 = vshrl.u32 %v1049, 7
    %v1051 = vsub.s32 %v1048, %v1050
    %v1052 = vrot.slane %v1045, %v1051
    %1053 = vrot.lane.b32.xlu0 %v1052, 30
    %v1054 = vpop.permute.xlu0 %1053
    %v1055 = vrot.slane %v1054, 7
    %vm1056 = vcmask 244736
    %v1057 = vsel %vm1056, %v1055, %v1054
    %vm1059 = vcmask 1040624
    %vm1060 = vmor %vm987, %vm1059
    %vm1061 = vcmask 485378
    %vm1062 = vmor %vm1061, %vm1060
    %1063 = vst.msk [vmem:[#allocation3 + $0x2] sm:$0x7] %vm1062, %v1057
    %v1064 = vcombine.high %v897, %v904
    %v1066 = vunpack.c.l.s4 1966171168
    %v1067 = vunpack.c.0.s8 %v1066
    %v1068 = vlaneseq
    %v1069 = vshrl.u32 %v1068, 7
    %v1070 = vsub.s32 %v1067, %v1069
    %v1071 = vrot.slane %v1064, %v1070
    %v1072 = vcombine.high %v920, %v927
    %v1074 = vunpack.c.l.s4 1966171168
    %v1075 = vunpack.c.0.s8 %v1074
    %v1076 = vlaneseq
    %v1077 = vshrl.u32 %v1076, 7
    %v1078 = vsub.s32 %v1075, %v1077
    %v1079 = vrot.slane %v1072, %v1078
    %v1081 = vunpack.c.l.s4 1935823168
    %v1082 = vunpack.c.0.s8 %v1081
    %v1083 = vlaneseq
    %v1084 = vshrl.u32 %v1083, 7
    %v1085 = vsub.s32 %v1082, %v1084
    %v1086 = vrot.slane %v1071, %v1085
    %v1087 = vcombine.high %v1086, %v1086
    %v1089 = vunpack.c.l.s4 1935823168
    %v1090 = vunpack.c.0.s8 %v1089
    %v1091 = vlaneseq
    %v1092 = vshrl.u32 %v1091, 7
    %v1093 = vsub.s32 %v1090, %v1092
    %v1094 = vrot.slane %v1086, %v1093
    %v1096 = vunpack.c.l.s4 1935823168
    %v1097 = vunpack.c.0.s8 %v1096
    %v1098 = vlaneseq
    %v1099 = vshrl.u32 %v1098, 7
    %v1100 = vsub.s32 %v1097, %v1099
    %v1101 = vrot.slane %v1087, %v1100
    %v1103 = vunpack.c.l.s4 1935823168
    %v1104 = vunpack.c.0.s8 %v1103
    %v1105 = vlaneseq
    %v1106 = vshrl.u32 %v1105, 7
    %v1107 = vsub.s32 %v1104, %v1106
    %v1108 = vrot.slane %v1079, %v1107
    %v1109 = vcombine.high %v1108, %v1108
    %v1111 = vunpack.c.l.s4 1935823168
    %v1112 = vunpack.c.0.s8 %v1111
    %v1113 = vlaneseq
    %v1114 = vshrl.u32 %v1113, 7
    %v1115 = vsub.s32 %v1112, %v1114
    %v1116 = vrot.slane %v1108, %v1115
    %v1118 = vunpack.c.l.s4 1935823168
    %v1119 = vunpack.c.0.s8 %v1118
    %v1120 = vlaneseq
    %v1121 = vshrl.u32 %v1120, 7
    %v1122 = vsub.s32 %v1119, %v1121
    %v1123 = vrot.slane %v1109, %v1122
    %v1124 = vunpack.c.l.b16 %v1094
    %v1125 = vunpack.c.h.b16 %v1094
    %v1126 = vunpack.c.l.b16 %v1101
    %v1127 = vunpack.c.l.b16 %v1116
    %v1128 = vunpack.c.h.b16 %v1116
    %v1129 = vunpack.c.l.b16 %v1123
    %v1130 = vrot.slane %v1127, 7
    %v1131 = vsel %vm987, %v1130, %v1124
    %v1132 = vrot.slane %v1128, 7
    %v1133 = vsel %vm987, %v1132, %v1125
    %v1134 = vrot.slane %v1129, 7
    %v1135 = vsel %vm987, %v1134, %v1126
    %v1136 = vpack.c.b16 %v1133, %v1131
    %v1137 = vpack.c.b16 %v1135, %v1135
    %v1139 = vunpack.c.l.s4 1966171168
    %v1140 = vunpack.c.0.s8 %v1139
    %v1141 = vlaneseq
    %v1142 = vshrl.u32 %v1141, 7
    %v1143 = vsub.s32 %v1140, %v1142
    %v1144 = vrot.slane %v1136, %v1143
    %v1146 = vunpack.c.l.s4 1966171168
    %v1147 = vunpack.c.0.s8 %v1146
    %v1148 = vlaneseq
    %v1149 = vshrl.u32 %v1148, 7
    %v1150 = vsub.s32 %v1147, %v1149
    %v1151 = vrot.slane %v1137, %v1150
    %v1152 = vcombine.low %v1144, %v1151
    %v1154 = vunpack.c.l.s4 1966171168
    %v1155 = vunpack.c.0.s8 %v1154
    %v1156 = vlaneseq
    %v1157 = vshrl.u32 %v1156, 7
    %v1158 = vsub.s32 %v1155, %v1157
    %v1159 = vrot.slane %v1152, %v1158
    %1160 = vrot.lane.b32.xlu0 %v1159, 60
    %v1161 = vpop.permute.xlu0 %1160
    %v1162 = vrot.slane %v1161, 7
    %vm1163 = vcmask 490496
    %v1164 = vsel %vm1163, %v1162, %v1161
    %vm1166 = vcmask 1040864
    %vm1167 = vmor %vm987, %vm1166
    %vm1168 = vcmask 731138
    %vm1169 = vmor %vm1168, %vm1167
    %1170 = vst.msk [vmem:[#allocation3 + $0x4] sm:$0x7] %vm1169, %v1164
    %v1171 = vrot.slane %v1124, 1
    %v1172 = vsel %vm987, %v1127, %v1171
    %v1173 = vrot.slane %v1125, 1
    %v1174 = vsel %vm987, %v1128, %v1173
    %v1175 = vrot.slane %v1126, 1
    %v1176 = vsel %vm987, %v1129, %v1175
    %v1177 = vpack.c.b16 %v1174, %v1172
    %v1178 = vpack.c.b16 %v1176, %v1176
    %v1180 = vunpack.c.l.s4 1966171168
    %v1181 = vunpack.c.0.s8 %v1180
    %v1182 = vlaneseq
    %v1183 = vshrl.u32 %v1182, 7
    %v1184 = vsub.s32 %v1181, %v1183
    %v1185 = vrot.slane %v1177, %v1184
    %v1187 = vunpack.c.l.s4 1966171168
    %v1188 = vunpack.c.0.s8 %v1187
    %v1189 = vlaneseq
    %v1190 = vshrl.u32 %v1189, 7
    %v1191 = vsub.s32 %v1188, %v1190
    %v1192 = vrot.slane %v1178, %v1191
    %v1193 = vcombine.low %v1185, %v1192
    %v1195 = vunpack.c.l.s4 1966171168
    %v1196 = vunpack.c.0.s8 %v1195
    %v1197 = vlaneseq
    %v1198 = vshrl.u32 %v1197, 7
    %v1199 = vsub.s32 %v1196, %v1198
    %v1200 = vrot.slane %v1193, %v1199
    %1201 = vrot.lane.b32.xlu0 %v1200, 90
    %v1202 = vpop.permute.xlu0 %1201
    %v1203 = vrot.slane %v1202, 7
    %v1204 = vsel %vm558, %v1203, %v1202
    %vm1206 = vcmask 1041104
    %vm1207 = vmor %vm987, %vm1206
    %vm1208 = vcmask 976898
    %vm1209 = vmor %vm1208, %vm1207
    %1210 = vst.msk [vmem:[#allocation3 + $0x6] sm:$0x7] %vm1209, %v1204
    %v1211 = vld [vmem:[#allocation3] sm:$0xff]
    %v1212 = vld [vmem:[#allocation3 + $0x8] sm:$0x1]
    %v1213 = vld [vmem:[%s4] sm:$0xff]
    %v1214 = vld [vmem:[%s4 + $0x8] sm:$0xff]
    %v1215 = vld [vmem:[%s4 + $0x10] sm:$0xff]
    %v1216 = vld [vmem:[%s4 + $0x18] sm:$0xff]
    %v1217 = vld [vmem:[%s4 + $0x20] sm:$0xf]
    %v1218 = vld [vmem:[%s4 + $0x24] sm:$0x11]
    %v1219 = vld [vmem:[%s4 + $0x2c] sm:$0x11]
    %v1220 = vld [vmem:[%s4 + $0x34] sm:$0x11]
    %v1221 = vld [vmem:[%s4 + $0x3c] sm:$0x11]
    %v1222 = vld [vmem:[%s4 + $0x44] sm:$0x1]
    %v1223 = vld [vmem:[%s5] sm:$0x1]
    %v1225 = vlaneseq
    %v1226 = vshrl.u32 %v1225, 7
    %v1227 = vsub.s32 0, %v1226
    %v1228 = vrot.slane %v1223, %v1227
    %v1232 = vcombine.high %v1211, %v1211
    %v1234 = vunpack.c.l.s4 1966171168
    %v1235 = vunpack.c.0.s8 %v1234
    %v1236 = vlaneseq
    %v1237 = vshrl.u32 %v1236, 7
    %v1238 = vsub.s32 %v1235, %v1237
    %v1239 = vrot.slane %v1211, %v1238
    %v1241 = vunpack.c.l.s4 1966171168
    %v1242 = vunpack.c.0.s8 %v1241
    %v1243 = vlaneseq
    %v1244 = vshrl.u32 %v1243, 7
    %v1245 = vsub.s32 %v1242, %v1244
    %v1246 = vrot.slane %v1232, %v1245
    %v1247 = vcombine.high %v1239, %v1239
    %v1248 = vcombine.high %v1246, %v1246
    %v1250 = vunpack.c.l.s4 1966171168
    %v1251 = vunpack.c.0.s8 %v1250
    %v1252 = vlaneseq
    %v1253 = vshrl.u32 %v1252, 7
    %v1254 = vsub.s32 %v1251, %v1253
    %v1255 = vrot.slane %v1239, %v1254
    %v1257 = vunpack.c.l.s4 1966171168
    %v1258 = vunpack.c.0.s8 %v1257
    %v1259 = vlaneseq
    %v1260 = vshrl.u32 %v1259, 7
    %v1261 = vsub.s32 %v1258, %v1260
    %v1262 = vrot.slane %v1246, %v1261
    %v1264 = vunpack.c.l.s4 1966171168
    %v1265 = vunpack.c.0.s8 %v1264
    %v1266 = vlaneseq
    %v1267 = vshrl.u32 %v1266, 7
    %v1268 = vsub.s32 %v1265, %v1267
    %v1269 = vrot.slane %v1247, %v1268
    %v1271 = vunpack.c.l.s4 1966171168
    %v1272 = vunpack.c.0.s8 %v1271
    %v1273 = vlaneseq
    %v1274 = vshrl.u32 %v1273, 7
    %v1275 = vsub.s32 %v1272, %v1274
    %v1276 = vrot.slane %v1248, %v1275
    %v1277 = vcombine.high %v1255, %v1255
    %v1278 = vcombine.high %v1262, %v1262
    %v1279 = vcombine.high %v1269, %v1269
    %v1280 = vcombine.high %v1276, %v1276
    %v1282 = vunpack.c.l.s4 1966171168
    %v1283 = vunpack.c.0.s8 %v1282
    %v1284 = vlaneseq
    %v1285 = vshrl.u32 %v1284, 7
    %v1286 = vsub.s32 %v1283, %v1285
    %v1287 = vrot.slane %v1212, %v1286
    %v1289 = vunpack.c.l.s4 1966171168
    %v1290 = vunpack.c.0.s8 %v1289
    %v1291 = vlaneseq
    %v1292 = vshrl.u32 %v1291, 7
    %v1293 = vsub.s32 %v1290, %v1292
    %v1294 = vrot.slane %v1287, %v1293
    %v1313 = vunpack.c.l.b16 %v1213
    %v1314 = vunpack.c.h.b16 %v1213
    %v1315 = vunpack.c.l.b16 %v1214
    %v1316 = vunpack.c.h.b16 %v1214
    %v1317 = vunpack.c.l.b16 %v1215
    %v1318 = vunpack.c.h.b16 %v1215
    %v1319 = vunpack.c.l.b16 %v1216
    %v1320 = vunpack.c.h.b16 %v1216
    %v1321 = vunpack.c.l.b16 %v1217
    %v1322 = vunpack.c.l.b16 %v1218
    %v1323 = vunpack.c.h.b16 %v1218
    %v1324 = vunpack.c.l.b16 %v1219
    %v1325 = vunpack.c.h.b16 %v1219
    %v1326 = vunpack.c.l.b16 %v1220
    %v1327 = vunpack.c.h.b16 %v1220
    %v1328 = vunpack.c.l.b16 %v1221
    %v1329 = vunpack.c.h.b16 %v1221
    %v1330 = vunpack.c.l.b16 %v1222
    %v1331 = vpack.c.b16 %v1322, %v1313
    %v1332 = vpack.c.b16 %v1323, %v1314
    %v1333 = vpack.c.b16 %v1324, %v1315
    %v1334 = vpack.c.b16 %v1325, %v1316
    %v1335 = vpack.c.b16 %v1326, %v1317
    %v1336 = vpack.c.b16 %v1327, %v1318
    %v1337 = vpack.c.b16 %v1328, %v1319
    %v1338 = vpack.c.b16 %v1329, %v1320
    %v1339 = vpack.c.b16 %v1330, %v1321
    %vm1348 = vcmask 982016
    %v1350 = vsel %vm1348, %v1294, 0
    %v1353 = vsel %vm1348, %v1339, 0
    %1355 = vmatprep.subr.bf16.mxu0 %v1332
    %1356 = vmatpush1.bf16.xpose.msra.mxu0 %v1331
    %1357 = vmatprep.subr.bf16.mxu0 0
    %1358 = vmatpush1.bf16.xpose.msra.mxu0 0
    %1359 = vmatprep.subr.bf16.mxu0 0
    %1360 = vmatpush1.bf16.xpose.msra.mxu0 0
    %1361 = vmatprep.subr.bf16.mxu0 0
    %1362 = vmatpush1.bf16.xpose.msra.mxu0 0
    %1363 = vmatprep.subr.bf16.mxu0 0
    %1364 = vmatpush1.bf16.xpose.msra.mxu0 0
    %1365 = vmatprep.subr.bf16.mxu0 0
    %1366 = vmatpush1.bf16.xpose.msra.mxu0 0
    %1367 = vmatprep.subr.bf16.mxu0 0
    %1368 = vmatpush1.bf16.xpose.msra.mxu0 0
    %1369 = vmatprep.subr.bf16.mxu0 0
    %1370 = vmatpush1.bf16.xpose.msra.mxu0 0
    %1371 = vmatprep.subr.bf16.mxu0 0
    %1372 = vmatpush1.bf16.xpose.msra.mxu0 0
    %1373 = vmatprep.subr.bf16.mxu0 0
    %1374 = vmatpush1.bf16.xpose.msra.mxu0 0
    %1375 = vmatprep.subr.bf16.mxu0 0
    %1376 = vmatpush1.bf16.xpose.msra.mxu0 0
    %1377 = vmatprep.subr.bf16.mxu0 0
    %1378 = vmatpush1.bf16.xpose.msra.mxu0 0
    %1379 = vmatprep.subr.bf16.mxu0 0
    %1380 = vmatpush1.bf16.xpose.msra.mxu0 0
    %1381 = vmatprep.subr.bf16.mxu0 0
    %1382 = vmatpush1.bf16.xpose.msra.mxu0 0
    %1383 = vmatprep.subr.bf16.mxu0 0
    %1384 = vmatpush1.bf16.xpose.msra.mxu0 0
    %1385 = vmatprep.subr.bf16.mxu0 0
    %1386 = vmatpush1.bf16.xpose.msra.mxu0 0
    %1387 = vmatprep.mubr.bf16.mxu0 %v1269
    %1388 = vmatmul.mubr.bf16.gmra.mrb[0].mxu0 %v1255
    %v1389 = vpop.f32.mrb[0].mxu0
    %v1390 = vadd.f32 %v1228, %v1389
    %v1391 = vpop.f32.mrb[0].mxu0
    %v1392 = vpop.f32.mrb[0].mxu0
    %v1393 = vpop.f32.mrb[0].mxu0
    %1394 = vdwg.mxu0
    %1395 = vmatprep.subr.bf16.mxu0 %v1334
    %1396 = vmatpush1.bf16.xpose.msra.mxu0 %v1333
    %1397 = vmatprep.subr.bf16.mxu0 0
    %1398 = vmatpush1.bf16.xpose.msra.mxu0 0
    %1399 = vmatprep.subr.bf16.mxu0 0
    %1400 = vmatpush1.bf16.xpose.msra.mxu0 0
    %1401 = vmatprep.subr.bf16.mxu0 0
    %1402 = vmatpush1.bf16.xpose.msra.mxu0 0
    %1403 = vmatprep.subr.bf16.mxu0 0
    %1404 = vmatpush1.bf16.xpose.msra.mxu0 0
    %1405 = vmatprep.subr.bf16.mxu0 0
    %1406 = vmatpush1.bf16.xpose.msra.mxu0 0
    %1407 = vmatprep.subr.bf16.mxu0 0
    %1408 = vmatpush1.bf16.xpose.msra.mxu0 0
    %1409 = vmatprep.subr.bf16.mxu0 0
    %1410 = vmatpush1.bf16.xpose.msra.mxu0 0
    %1411 = vmatprep.subr.bf16.mxu0 0
    %1412 = vmatpush1.bf16.xpose.msra.mxu0 0
    %1413 = vmatprep.subr.bf16.mxu0 0
    %1414 = vmatpush1.bf16.xpose.msra.mxu0 0
    %1415 = vmatprep.subr.bf16.mxu0 0
    %1416 = vmatpush1.bf16.xpose.msra.mxu0 0
    %1417 = vmatprep.subr.bf16.mxu0 0
    %1418 = vmatpush1.bf16.xpose.msra.mxu0 0
    %1419 = vmatprep.subr.bf16.mxu0 0
    %1420 = vmatpush1.bf16.xpose.msra.mxu0 0
    %1421 = vmatprep.subr.bf16.mxu0 0
    %1422 = vmatpush1.bf16.xpose.msra.mxu0 0
    %1423 = vmatprep.subr.bf16.mxu0 0
    %1424 = vmatpush1.bf16.xpose.msra.mxu0 0
    %1425 = vmatprep.subr.bf16.mxu0 0
    %1426 = vmatpush1.bf16.xpose.msra.mxu0 0
    %1427 = vmatprep.mubr.bf16.mxu0 %v1279
    %1428 = vmatmul.mubr.bf16.gmra.mrb[0].mxu0 %v1277
    %v1429 = vpop.f32.mrb[0].mxu0
    %v1430 = vadd.f32 %v1390, %v1429
    %v1431 = vpop.f32.mrb[0].mxu0
    %v1432 = vpop.f32.mrb[0].mxu0
    %v1433 = vpop.f32.mrb[0].mxu0
    %1434 = vdwg.mxu0
    %1435 = vmatprep.subr.bf16.mxu0 %v1336
    %1436 = vmatpush1.bf16.xpose.msra.mxu0 %v1335
    %1437 = vmatprep.subr.bf16.mxu0 0
    %1438 = vmatpush1.bf16.xpose.msra.mxu0 0
    %1439 = vmatprep.subr.bf16.mxu0 0
    %1440 = vmatpush1.bf16.xpose.msra.mxu0 0
    %1441 = vmatprep.subr.bf16.mxu0 0
    %1442 = vmatpush1.bf16.xpose.msra.mxu0 0
    %1443 = vmatprep.subr.bf16.mxu0 0
    %1444 = vmatpush1.bf16.xpose.msra.mxu0 0
    %1445 = vmatprep.subr.bf16.mxu0 0
    %1446 = vmatpush1.bf16.xpose.msra.mxu0 0
    %1447 = vmatprep.subr.bf16.mxu0 0
    %1448 = vmatpush1.bf16.xpose.msra.mxu0 0
    %1449 = vmatprep.subr.bf16.mxu0 0
    %1450 = vmatpush1.bf16.xpose.msra.mxu0 0
    %1451 = vmatprep.subr.bf16.mxu0 0
    %1452 = vmatpush1.bf16.xpose.msra.mxu0 0
    %1453 = vmatprep.subr.bf16.mxu0 0
    %1454 = vmatpush1.bf16.xpose.msra.mxu0 0
    %1455 = vmatprep.subr.bf16.mxu0 0
    %1456 = vmatpush1.bf16.xpose.msra.mxu0 0
    %1457 = vmatprep.subr.bf16.mxu0 0
    %1458 = vmatpush1.bf16.xpose.msra.mxu0 0
    %1459 = vmatprep.subr.bf16.mxu0 0
    %1460 = vmatpush1.bf16.xpose.msra.mxu0 0
    %1461 = vmatprep.subr.bf16.mxu0 0
    %1462 = vmatpush1.bf16.xpose.msra.mxu0 0
    %1463 = vmatprep.subr.bf16.mxu0 0
    %1464 = vmatpush1.bf16.xpose.msra.mxu0 0
    %1465 = vmatprep.subr.bf16.mxu0 0
    %1466 = vmatpush1.bf16.xpose.msra.mxu0 0
    %1467 = vmatprep.mubr.bf16.mxu0 %v1276
    %1468 = vmatmul.mubr.bf16.gmra.mrb[0].mxu0 %v1262
    %v1469 = vpop.f32.mrb[0].mxu0
    %v1470 = vadd.f32 %v1430, %v1469
    %v1471 = vpop.f32.mrb[0].mxu0
    %v1472 = vpop.f32.mrb[0].mxu0
    %v1473 = vpop.f32.mrb[0].mxu0
    %1474 = vdwg.mxu0
    %1475 = vmatprep.subr.bf16.mxu0 %v1338
    %1476 = vmatpush1.bf16.xpose.msra.mxu0 %v1337
    %1477 = vmatprep.subr.bf16.mxu0 0
    %1478 = vmatpush1.bf16.xpose.msra.mxu0 0
    %1479 = vmatprep.subr.bf16.mxu0 0
    %1480 = vmatpush1.bf16.xpose.msra.mxu0 0
    %1481 = vmatprep.subr.bf16.mxu0 0
    %1482 = vmatpush1.bf16.xpose.msra.mxu0 0
    %1483 = vmatprep.subr.bf16.mxu0 0
    %1484 = vmatpush1.bf16.xpose.msra.mxu0 0
    %1485 = vmatprep.subr.bf16.mxu0 0
    %1486 = vmatpush1.bf16.xpose.msra.mxu0 0
    %1487 = vmatprep.subr.bf16.mxu0 0
    %1488 = vmatpush1.bf16.xpose.msra.mxu0 0
    %1489 = vmatprep.subr.bf16.mxu0 0
    %1490 = vmatpush1.bf16.xpose.msra.mxu0 0
    %1491 = vmatprep.subr.bf16.mxu0 0
    %1492 = vmatpush1.bf16.xpose.msra.mxu0 0
    %1493 = vmatprep.subr.bf16.mxu0 0
    %1494 = vmatpush1.bf16.xpose.msra.mxu0 0
    %1495 = vmatprep.subr.bf16.mxu0 0
    %1496 = vmatpush1.bf16.xpose.msra.mxu0 0
    %1497 = vmatprep.subr.bf16.mxu0 0
    %1498 = vmatpush1.bf16.xpose.msra.mxu0 0
    %1499 = vmatprep.subr.bf16.mxu0 0
    %1500 = vmatpush1.bf16.xpose.msra.mxu0 0
    %1501 = vmatprep.subr.bf16.mxu0 0
    %1502 = vmatpush1.bf16.xpose.msra.mxu0 0
    %1503 = vmatprep.subr.bf16.mxu0 0
    %1504 = vmatpush1.bf16.xpose.msra.mxu0 0
    %1505 = vmatprep.subr.bf16.mxu0 0
    %1506 = vmatpush1.bf16.xpose.msra.mxu0 0
    %1507 = vmatprep.mubr.bf16.mxu0 %v1280
    %1508 = vmatmul.mubr.bf16.gmra.mrb[0].mxu0 %v1278
    %v1509 = vpop.f32.mrb[0].mxu0
    %v1510 = vadd.f32 %v1470, %v1509
    %v1511 = vpop.f32.mrb[0].mxu0
    %v1512 = vpop.f32.mrb[0].mxu0
    %v1513 = vpop.f32.mrb[0].mxu0
    %1514 = vdwg.mxu0
    %1515 = vmatprep.subr.bf16.mxu0 0
    %1516 = vmatpush1.bf16.xpose.msra.mxu0 %v1353
    %1517 = vmatprep.subr.bf16.mxu0 0
    %1518 = vmatpush1.bf16.xpose.msra.mxu0 0
    %1519 = vmatprep.subr.bf16.mxu0 0
    %1520 = vmatpush1.bf16.xpose.msra.mxu0 0
    %1521 = vmatprep.subr.bf16.mxu0 0
    %1522 = vmatpush1.bf16.xpose.msra.mxu0 0
    %1523 = vmatprep.subr.bf16.mxu0 0
    %1524 = vmatpush1.bf16.xpose.msra.mxu0 0
    %1525 = vmatprep.subr.bf16.mxu0 0
    %1526 = vmatpush1.bf16.xpose.msra.mxu0 0
    %1527 = vmatprep.subr.bf16.mxu0 0
    %1528 = vmatpush1.bf16.xpose.msra.mxu0 0
    %1529 = vmatprep.subr.bf16.mxu0 0
    %1530 = vmatpush1.bf16.xpose.msra.mxu0 0
    %1531 = vmatprep.subr.bf16.mxu0 0
    %1532 = vmatpush1.bf16.xpose.msra.mxu0 0
    %1533 = vmatprep.subr.bf16.mxu0 0
    %1534 = vmatpush1.bf16.xpose.msra.mxu0 0
    %1535 = vmatprep.subr.bf16.mxu0 0
    %1536 = vmatpush1.bf16.xpose.msra.mxu0 0
    %1537 = vmatprep.subr.bf16.mxu0 0
    %1538 = vmatpush1.bf16.xpose.msra.mxu0 0
    %1539 = vmatprep.subr.bf16.mxu0 0
    %1540 = vmatpush1.bf16.xpose.msra.mxu0 0
    %1541 = vmatprep.subr.bf16.mxu0 0
    %1542 = vmatpush1.bf16.xpose.msra.mxu0 0
    %1543 = vmatprep.subr.bf16.mxu0 0
    %1544 = vmatpush1.bf16.xpose.msra.mxu0 0
    %1545 = vmatprep.subr.bf16.mxu0 0
    %1546 = vmatpush1.bf16.xpose.msra.mxu0 0
    %1547 = vmatprep.mubr.bf16.mxu0 0
    %1548 = vmatmul.mubr.bf16.gmra.mrb[0].mxu0 %v1350
    %v1549 = vpop.f32.mrb[0].mxu0
    %v1550 = vadd.f32 %v1510, %v1549
    %v1551 = vpop.f32.mrb[0].mxu0
    %v1552 = vpop.f32.mrb[0].mxu0
    %v1553 = vpop.f32.mrb[0].mxu0
    %1554 = vdwg.mxu0
    %v1555 = vxor.u32 %v1550, 2147483648
    %v1556 = vmul.f32 %v1555, 1.442695
    %v1557 = vpow.pop %v1556
    %v1558 = vadd.f32 %v1557, 1.0
    %v1559 = vrcp.pop %v1558
    %v1560 = vmul.f32 1.0, %v1559
    %vm1561 = vcmask 74752
    %1562 = vst.msk [vmem:[#allocation4] sm:$0x3] %vm1561, %v1560
    // Predicated region
    $region26: #{_fused_forward.1} parent=1 // pred_check
      _
    $region27: #{_fused_forward.1} parent=1 // pred_check_branch
      %1564 = sbr.rel (0) target = $region29
    $region28: #{_fused_forward.1} parent=1 // pred_region
      %s1566 = ssub.s32 32, 32
      %1567 = vsyncadd [#allocation5], %s1566
      %s1569 = sshll.u32 [#allocation4], 4
      %s1570 = int_to_ptr.vmem [resolvable:$true] %s1569
      %1572 = dma.vmem_to_hbm [thread:$0]  %s1570, 32, %s6, [#allocation5]
    $region29: #{_fused_forward.1} parent=1 // pred_fallthru
      _
    // Predicated region
    $region30: #{_fused_forward.1} parent=1 // pred_check
      _
    $region31: #{_fused_forward.1} parent=1 // pred_check_branch
      %1574 = sbr.rel (0) target = $region33
    $region32: #{_fused_forward.1} parent=1 // pred_region
      %1575 = dma.done [#allocation5], 32
    $region33: #{_fused_forward.1} parent=1 // pred_fallthru
      _
    %1576 = vsyncpa [#allocation5], 1

</llo_original>
